<compile_context>
chip_gen: v5e
topology: v5e:2x2
jax: 0.10.0
libtpu: 0.0.40
codegen_flags: <defaults>
</compile_context>

<pallas_src>
import math
import functools

import jax
import jax.numpy as jnp
from jax.experimental import pallas as pl
from jax.experimental.pallas import tpu as pltpu


# --------------------------------------------------------------------------- #
# Kernel
# --------------------------------------------------------------------------- #
def _imha_kernel(q_ref, k_ref, v_ref, mask_ref,
                 wq_ref, bq_ref, wk_ref, bk_ref,
                 wv_ref, bv_ref, wo_ref, bo_ref,
                 out_ref, attn_out_ref, attn_sc_ref,
                 *, d_model, num_heads, bt, sq, sk, has_mask):
    D, H = d_model, num_heads
    inv_h = 1.0 / H

    # Collapse (Bt, S, D) -> (Bt*S, D): leading-dim merge is layout preserving,
    # so every projection below is one MXU matmul with M = Bt*S rows.
    q2 = q_ref[...].reshape(bt * sq, D)
    k2 = k_ref[...].reshape(bt * sk, D)
    v2 = v_ref[...].reshape(bt * sk, D)

    # Shared-across-heads V projection (done once).
    v_proj = (jnp.dot(v2, wv_ref[...], preferred_element_type=jnp.float32)
              + bv_ref[...]).reshape(bt, sk, D)

    # Hoisted mask: one compare + one broadcast for the whole head loop (JAX
    # does not CSE broadcast_in_dim, so doing this per head traces H broadcasts).
    # mask_ref is (1|Bt, Sq, Sk); leading 1 == mask shared across the batch.
    if has_mask:
        masked = jnp.broadcast_to(mask_ref[...] > 0.5, (bt, sq, sk))

    # Only the softmax probabilities are accumulated in the head loop: V is
    # shared across heads, so mean_h(P_h @ V) == (mean_h P_h) @ V and a single
    # PV matmul after the loop is mathematically identical (up to fp reorder).
    acc_sc = jnp.zeros((bt, sq, sk), jnp.float32)
    for h in range(H):                       # num_heads is small -> static unroll
        # Per-head projections from stacked (H, D, D) weights: each result is a
        # lane-contiguous (., D) tile -- no unaligned column slice of a fused
        # (., H*D) activation when D % 128 != 0 (no per-head XLU relayout).
        # The 1/sqrt(D) score scale is already folded into wq/bq (wrapper).
        qh = (jnp.dot(q2, wq_ref[h], preferred_element_type=jnp.float32)
              + bq_ref[h]).reshape(bt, sq, D)
        kh = (jnp.dot(k2, wk_ref[h], preferred_element_type=jnp.float32)
              + bk_ref[h]).reshape(bt, sk, D)
        # Batched QK^T contracting the last dims (no explicit kh transpose).
        scores = jnp.einsum('bqd,bkd->bqk', qh, kh,
                            preferred_element_type=jnp.float32)     # (Bt, Sq, Sk)
        if has_mask:
            # Single VPU select per head against the pre-broadcast mask;
            # exact masked_fill semantics (fully-masked rows -> uniform).
            scores = jnp.where(masked, -1e9, scores)
        m = jnp.max(scores, axis=-1, keepdims=True)
        p = jnp.exp(scores - m)
        denom = jnp.sum(p, axis=-1, keepdims=True)
        # EUP reciprocal (its own VLIW slot) + VPU multiply instead of a divide.
        acc_sc = acc_sc + p * pl.reciprocal(denom, approx=True)

    mean_sc = acc_sc * inv_h                                         # (Bt, Sq, Sk)
    # Single shared-V matmul, factored out of the head loop.
    mean_out = jnp.einsum('bqk,bkd->bqd', mean_sc, v_proj,
                          preferred_element_type=jnp.float32)        # (Bt, Sq, D)
    out = (jnp.dot(mean_out.reshape(bt * sq, D), wo_ref[...],
                   preferred_element_type=jnp.float32) + bo_ref[...])

    # TODO(synk): for d_model < 128 the output stores are sub-lane-width masked
    # vst's; zero-padding the last dim would inflate HBM writeback and an
    # in-kernel minor-dim reshape to a (Bt, Sq*D) slab costs a relayout, so the
    # natural (bytes-minimal) layout is kept here.
    out_ref[...] = out.reshape(bt, sq, D)
    attn_out_ref[...] = mean_out
    attn_sc_ref[...] = mean_sc


# --------------------------------------------------------------------------- #
# VMEM accounting & block-batch selection
# --------------------------------------------------------------------------- #
def _ceil_to(x, m):
    return -(-x // m) * m


def _f32_tile_bytes(shape):
    """f32 VMEM bytes of `shape`, padded to the native (8, 128) vreg tiling."""
    s = list(shape)
    if len(s) == 1:
        s = [1] + s
    s[-1] = _ceil_to(s[-1], 128)
    s[-2] = _ceil_to(s[-2], 8)
    n = 1
    for d in s:
        n *= d
    return 4 * n


def _vmem_capacity_bytes():
    try:
        cap = getattr(pltpu.get_tpu_info(), "vmem_capacity_bytes", None)
        if cap:
            return int(cap)
    except Exception:
        pass
    return 64 << 20     # conservative fallback = v7x per-core VMEM


def _vmem_estimate_bytes(bt, sq, sk, d, h, mask_bt):
    """Everything pallas_call really allocates per grid step: double-buffered
    input / weight / mask / output blocks plus padded in-kernel intermediates."""
    pb = _f32_tile_bytes
    blocks = (pb((bt, sq, d)) + 2 * pb((bt, sk, d))              # q, k, v
              + pb((mask_bt, sq, sk))                            # mask
              + 2 * (pb((h, d, d)) + pb((h, 1, d)))              # Wq/bq, Wk/bk
              + 2 * (pb((d, d)) + pb((1, d)))                    # Wv/bv, Wo/bo
              + 2 * pb((bt, sq, d)) + pb((bt, sq, sk)))          # out, attn_out, attn_sc
    pipelined = 2 * blocks        # default double-buffering (incl. constant-index blocks)
    intermediates = (pb((bt, sk, d))                             # v_proj
                     + pb((bt, sq, sk))                          # broadcast mask
                     + pb((bt * sq, d)) + pb((bt * sk, d))       # qh, kh
                     + 3 * pb((bt, sq, sk))                      # scores / p / acc_sc
                     + 2 * pb((bt, sq, d))                       # mean_out, out (3-D)
                     + pb((bt * sq, d)))                         # out (2-D)
    return pipelined + intermediates


def _pick_block_batch(B, sq, sk, d, h, mask_per_batch, budget_bytes):
    """Pick Bt (a divisor of B) that (1) fits the VMEM budget, (2) keeps >= 2
    grid steps whenever B >= 2 (v7x has 2 TensorCores; a 1-step grid also fully
    exposes the q/k/v DMA and attn_sc writeback), and (3) stops growing once the
    projection matmuls have >= 256 rows, keeping more pipeline steps instead."""
    divisors = [t for t in range(1, B + 1) if B % t == 0]
    fits = [t for t in divisors
            if _vmem_estimate_bytes(t, sq, sk, d, h, t if mask_per_batch else 1)
            <= budget_bytes]
    if not fits:
        # TODO(synk): even Bt=1 exceeds the budget for very large (S, D, H);
        # that regime needs a second, flash-style Sq-tiling grid axis.
        fits = [1]
    multi_step = [t for t in fits if B // t >= 2] or fits
    filled = [t for t in multi_step if t * sq >= 256]     # MXU M-dim fill target
    return min(filled) if filled else max(multi_step)


# --------------------------------------------------------------------------- #
# Wrapper
# --------------------------------------------------------------------------- #
def interpretable_mha(q, k, v, params, mask=None, *, d_model, num_heads):
    """q: (B, Sq, D); k, v: (B, Sk, D).
    mask: None, or broadcastable to (Sq, Sk) (shared), or (B, Sq, Sk) /
    (B, 1, Sq, Sk) (per batch); nonzero/True where attention is disallowed.
    Returns (output, attn_outputs, attn_scores) like the PyTorch module."""
    B, Sq, D = q.shape
    Sk = k.shape[1]
    assert D == d_model and k.shape == v.shape

    wq, bq, wk, bk, wv, bv, wo, bo = params
    scale = 1.0 / math.sqrt(d_model)

    # Per-head stacked weights (H, D, D) / (H, 1, D): the static slicing is done
    # once here (free in XLA) so the kernel's per-head projections stay
    # lane-aligned.  The 1/sqrt(D) score scale is folded into Wq / bq.
    wq_h = (wq * scale).reshape(D, num_heads, D).transpose(1, 0, 2)
    bq_h = (bq * scale).reshape(num_heads, 1, D)
    wk_h = wk.reshape(D, num_heads, D).transpose(1, 0, 2)
    bk_h = bk.reshape(num_heads, 1, D)

    # Mask: a single shared (1, Sq, Sk) block, or a streamed (Bt, Sq, Sk) block
    # when a genuinely per-batch mask is supplied (no silent collapse to mask[0]).
    has_mask = mask is not None
    mask_per_batch = False
    if not has_mask:
        mask3 = jnp.zeros((1, Sq, Sk), jnp.float32)
    else:
        m = jnp.asarray(mask, jnp.float32)
        if m.ndim == 4:
            if m.shape[1] != 1:
                # TODO(synk): genuinely per-head masks would need a per-head
                # mask block inside the head loop.
                raise NotImplementedError("per-head masks are not supported")
            m = m[:, 0]
        if m.ndim == 3 and m.shape[0] > 1:
            mask_per_batch = True
            mask3 = jnp.broadcast_to(m, (B, Sq, Sk))
        else:
            m2 = m[0] if m.ndim == 3 else m
            mask3 = jnp.broadcast_to(m2, (Sq, Sk))[None]

    # Generation-aware VMEM budget (v7x: 64 MiB physical -> ~45 MiB budget;
    # v5e/v6e: 128 MiB physical -> ~90 MiB), used both for Bt selection and as
    # the explicit scoped-VMEM limit (overrides the 16/32 MiB defaults).
    capacity = _vmem_capacity_bytes()
    budget = int(0.7 * capacity)
    Bt = _pick_block_batch(B, Sq, Sk, D, num_heads, mask_per_batch, budget)

    kernel = functools.partial(_imha_kernel, d_model=d_model, num_heads=num_heads,
                               bt=Bt, sq=Sq, sk=Sk, has_mask=has_mask)

    mask_bt = Bt if mask_per_batch else 1
    mask_spec = pl.BlockSpec(
        (mask_bt, Sq, Sk),
        (lambda b: (b, 0, 0)) if mask_per_batch else (lambda b: (0, 0, 0)))

    out_shapes = (
        jax.ShapeDtypeStruct((B, Sq, D), jnp.float32),   # output
        jax.ShapeDtypeStruct((B, Sq, D), jnp.float32),   # attn_outputs (head mean)
        jax.ShapeDtypeStruct((B, Sq, Sk), jnp.float32),  # attn_scores  (head mean)
    )

    # Blocks cover Bt whole batch elements; the last two dims of every block
    # equal the full array dims, so the (8,128) tiling constraint is satisfied.
    return pl.pallas_call(
        kernel,
        out_shape=out_shapes,
        grid=(B // Bt,),
        in_specs=[
            pl.BlockSpec((Bt, Sq, D), lambda b: (b, 0, 0)),          # q
            pl.BlockSpec((Bt, Sk, D), lambda b: (b, 0, 0)),          # k
            pl.BlockSpec((Bt, Sk, D), lambda b: (b, 0, 0)),          # v
            mask_spec,                                                # mask
            pl.BlockSpec((num_heads, D, D), lambda b: (0, 0, 0)),     # Wq (per-head, scaled)
            pl.BlockSpec((num_heads, 1, D), lambda b: (0, 0, 0)),     # bq (scaled)
            pl.BlockSpec((num_heads, D, D), lambda b: (0, 0, 0)),     # Wk (per-head)
            pl.BlockSpec((num_heads, 1, D), lambda b: (0, 0, 0)),     # bk
            pl.BlockSpec((D, D), lambda b: (0, 0)),                   # Wv
            pl.BlockSpec((1, D), lambda b: (0, 0)),                   # bv
            pl.BlockSpec((D, D), lambda b: (0, 0)),                   # Wo
            pl.BlockSpec((1, D), lambda b: (0, 0)),                   # bo
        ],
        out_specs=[
            pl.BlockSpec((Bt, Sq, D), lambda b: (b, 0, 0)),
            pl.BlockSpec((Bt, Sq, D), lambda b: (b, 0, 0)),
            pl.BlockSpec((Bt, Sq, Sk), lambda b: (b, 0, 0)),
        ],
        compiler_params=pltpu.CompilerParams(
            dimension_semantics=("parallel",),
            vmem_limit_bytes=budget,
        ),
    )(q, k, v, mask3, wq_h, bq_h, wk_h, bk_h, wv, bv, wo, bo)


# --------------------------------------------------------------------------- #
# Params / reference / test
# --------------------------------------------------------------------------- #
def init_params(key, d_model, num_heads):
    """Deterministic PyTorch-Linear-style uniform init (weights stored (in, out))."""
    HD = d_model * num_heads
    bound = 1.0 / math.sqrt(d_model)
    ks = jax.random.split(key, 8)
    u = lambda k, shape: jax.random.uniform(k, shape, jnp.float32, -bound, bound)
    wq, bq = u(ks[0], (d_model, HD)), u(ks[1], (1, HD))
    wk, bk = u(ks[2], (d_model, HD)), u(ks[3], (1, HD))
    wv, bv = u(ks[4], (d_model, d_model)), u(ks[5], (1, d_model))
    wo, bo = u(ks[6], (d_model, d_model)), u(ks[7], (1, d_model))
    return (wq, bq, wk, bk, wv, bv, wo, bo)


def reference_mha(q, k, v, params, mask, d_model, num_heads):
    """Pure-JAX replica of the PyTorch forward, for correctness checking."""
    wq, bq, wk, bk, wv, bv, wo, bo = params
    B, Sq, D = q.shape
    Sk = k.shape[1]
    qp = (q @ wq + bq).reshape(B, Sq, num_heads, D).transpose(0, 2, 1, 3)
    kp = (k @ wk + bk).reshape(B, Sk, num_heads, D).transpose(0, 2, 1, 3)
    vp = jnp.tile(v @ wv + bv, (1, 1, num_heads)).reshape(B, Sk, num_heads, D).transpose(0, 2, 1, 3)
    sc = jnp.einsum("bhqd,bhkd->bhqk", qp, kp) / math.sqrt(d_model)
    if mask is not None:
        sc = jnp.where(mask[None, None, :, :] > 0.5, -1e9, sc)
    sc = jax.nn.softmax(sc, axis=-1)
    ao = jnp.einsum("bhqk,bhkd->bhqd", sc, vp)
    ao_mean = ao.mean(axis=1)
    sc_mean = sc.mean(axis=1)
    out = ao_mean @ wo + bo
    return out, ao_mean, sc_mean


if __name__ == "__main__":
    B, S, D, H = 2, 8, 32, 4

    key = jax.random.PRNGKey(0)
    kq, kk, kv, kp = jax.random.split(key, 4)
    q = jax.random.normal(kq, (B, S, D), jnp.float32)
    k = jax.random.normal(kk, (B, S, D), jnp.float32)
    v = jax.random.normal(kv, (B, S, D), jnp.float32)
    params = init_params(kp, D, H)

    # Causal mask (1.0 where attention is disallowed), shared across the batch.
    causal = jnp.triu(jnp.ones((S, S), jnp.float32), k=1)

    out, attn_out, attn_sc = interpretable_mha(
        q, k, v, params, mask=causal, d_model=D, num_heads=H)
    jax.block_until_ready((out, attn_out, attn_sc))

    # Verify against the pure-JAX reference of the PyTorch forward.
    # Tolerance is 5e-3 because the softmax denominator uses the approximate
    # (EUP) reciprocal; everything else is exact f32.
    r_out, r_ao, r_sc = reference_mha(q, k, v, params, causal, D, H)
    assert jnp.allclose(out, r_out, atol=5e-3, rtol=5e-3)
    assert jnp.allclose(attn_out, r_ao, atol=5e-3, rtol=5e-3)
    assert jnp.allclose(attn_sc, r_sc, atol=5e-3, rtol=5e-3)

    print("KERNEL_OK")
</pallas_src>

<mosaic_0001>
module attributes {stable_mosaic.version = 11 : i64} {
  func.func @_imha_kernel(%arg0: i32, %arg1: memref<1x8x32xf32, #tpu.memory_space<vmem>>, %arg2: memref<1x8x32xf32, #tpu.memory_space<vmem>>, %arg3: memref<1x8x32xf32, #tpu.memory_space<vmem>>, %arg4: memref<1x8x8xf32, #tpu.memory_space<vmem>>, %arg5: memref<4x32x32xf32, #tpu.memory_space<vmem>>, %arg6: memref<4x1x32xf32, #tpu.memory_space<vmem>>, %arg7: memref<4x32x32xf32, #tpu.memory_space<vmem>>, %arg8: memref<4x1x32xf32, #tpu.memory_space<vmem>>, %arg9: memref<32x32xf32, #tpu.memory_space<vmem>>, %arg10: memref<1x32xf32, #tpu.memory_space<vmem>>, %arg11: memref<32x32xf32, #tpu.memory_space<vmem>>, %arg12: memref<1x32xf32, #tpu.memory_space<vmem>>, %arg13: memref<1x8x32xf32, #tpu.memory_space<vmem>>, %arg14: memref<1x8x32xf32, #tpu.memory_space<vmem>>, %arg15: memref<1x8x8xf32, #tpu.memory_space<vmem>>) attributes {dimension_semantics = [#tpu.dimension_semantics<parallel>], iteration_bounds = array<i64: 2>, scalar_prefetch = 0 : i64, scratch_operands = 0 : i64, tpu.core_type = #tpu.core_type<tc>, window_params = [{transform_indices = @transform_0, window_bounds = array<i64: 1, 8, 32>}, {transform_indices = @transform_1, window_bounds = array<i64: 1, 8, 32>}, {transform_indices = @transform_2, window_bounds = array<i64: 1, 8, 32>}, {pipeline_mode = #tpu.pipeline_mode<synchronous>, transform_indices = @transform_3, window_bounds = array<i64: 1, 8, 8>}, {pipeline_mode = #tpu.pipeline_mode<synchronous>, transform_indices = @transform_4, window_bounds = array<i64: 4, 32, 32>}, {pipeline_mode = #tpu.pipeline_mode<synchronous>, transform_indices = @transform_5, window_bounds = array<i64: 4, 1, 32>}, {pipeline_mode = #tpu.pipeline_mode<synchronous>, transform_indices = @transform_6, window_bounds = array<i64: 4, 32, 32>}, {pipeline_mode = #tpu.pipeline_mode<synchronous>, transform_indices = @transform_7, window_bounds = array<i64: 4, 1, 32>}, {pipeline_mode = #tpu.pipeline_mode<synchronous>, transform_indices = @transform_8, window_bounds = array<i64: 32, 32>}, {pipeline_mode = #tpu.pipeline_mode<synchronous>, transform_indices = @transform_9, window_bounds = array<i64: 1, 32>}, {pipeline_mode = #tpu.pipeline_mode<synchronous>, transform_indices = @transform_10, window_bounds = array<i64: 32, 32>}, {pipeline_mode = #tpu.pipeline_mode<synchronous>, transform_indices = @transform_11, window_bounds = array<i64: 1, 32>}, {transform_indices = @transform_12, window_bounds = array<i64: 1, 8, 32>}, {transform_indices = @transform_13, window_bounds = array<i64: 1, 8, 32>}, {transform_indices = @transform_14, window_bounds = array<i64: 1, 8, 8>}]} {
    %c0 = arith.constant 0 : index
    %c0_0 = arith.constant 0 : index
    %c0_1 = arith.constant 0 : index
    %0 = vector.load %arg1[%c0, %c0_0, %c0_1] : memref<1x8x32xf32, #tpu.memory_space<vmem>>, vector<1x8x32xf32>
    %1 = vector.shape_cast %0 : vector<1x8x32xf32> to vector<8x32xf32>
    %c0_2 = arith.constant 0 : index
    %c0_3 = arith.constant 0 : index
    %c0_4 = arith.constant 0 : index
    %2 = vector.load %arg2[%c0_2, %c0_3, %c0_4] : memref<1x8x32xf32, #tpu.memory_space<vmem>>, vector<1x8x32xf32>
    %3 = vector.shape_cast %2 : vector<1x8x32xf32> to vector<8x32xf32>
    %c0_5 = arith.constant 0 : index
    %c0_6 = arith.constant 0 : index
    %c0_7 = arith.constant 0 : index
    %4 = vector.load %arg3[%c0_5, %c0_6, %c0_7] : memref<1x8x32xf32, #tpu.memory_space<vmem>>, vector<1x8x32xf32>
    %5 = vector.shape_cast %4 : vector<1x8x32xf32> to vector<8x32xf32>
    %c0_8 = arith.constant 0 : index
    %c0_9 = arith.constant 0 : index
    %6 = vector.load %arg9[%c0_8, %c0_9] : memref<32x32xf32, #tpu.memory_space<vmem>>, vector<32x32xf32>
    %cst = arith.constant dense<0.000000e+00> : vector<8x32xf32>
    %7 = tpu.matmul %5, %6, %cst {dimension_numbers = #tpu.dot_dimension_numbers<[1], [0], [0], [1], [0, 0, 1, 1], [], []>} : vector<8x32xf32>, vector<32x32xf32>, vector<8x32xf32> -> vector<8x32xf32>
    %c0_10 = arith.constant 0 : index
    %c0_11 = arith.constant 0 : index
    %8 = vector.load %arg10[%c0_10, %c0_11] : memref<1x32xf32, #tpu.memory_space<vmem>>, vector<1x32xf32>
    %9 = vector.broadcast %8 : vector<1x32xf32> to vector<8x32xf32>
    %10 = arith.addf %7, %9 : vector<8x32xf32>
    %11 = vector.shape_cast %10 : vector<8x32xf32> to vector<1x8x32xf32>
    %c0_12 = arith.constant 0 : index
    %c0_13 = arith.constant 0 : index
    %c0_14 = arith.constant 0 : index
    %12 = vector.load %arg4[%c0_12, %c0_13, %c0_14] : memref<1x8x8xf32, #tpu.memory_space<vmem>>, vector<1x8x8xf32>
    %cst_15 = arith.constant 5.000000e-01 : f32
    %13 = vector.broadcast %cst_15 : f32 to vector<1x8x8xf32>
    %14 = arith.cmpf ogt, %12, %13 : vector<1x8x8xf32>
    %cst_16 = arith.constant 0.000000e+00 : f32
    %15 = vector.broadcast %cst_16 : f32 to vector<1x8x8xf32>
    %c0_17 = arith.constant 0 : index
    %c0_18 = arith.constant 0 : index
    %c0_19 = arith.constant 0 : index
    %16 = vector.load %arg5[%c0_17, %c0_18, %c0_19] : memref<4x32x32xf32, #tpu.memory_space<vmem>>, vector<1x32x32xf32>
    %17 = vector.shape_cast %16 : vector<1x32x32xf32> to vector<32x32xf32>
    %cst_20 = arith.constant dense<0.000000e+00> : vector<8x32xf32>
    %18 = tpu.matmul %1, %17, %cst_20 {dimension_numbers = #tpu.dot_dimension_numbers<[1], [0], [0], [1], [0, 0, 1, 1], [], []>} : vector<8x32xf32>, vector<32x32xf32>, vector<8x32xf32> -> vector<8x32xf32>
    %c0_21 = arith.constant 0 : index
    %c0_22 = arith.constant 0 : index
    %c0_23 = arith.constant 0 : index
    %19 = vector.load %arg6[%c0_21, %c0_22, %c0_23] : memref<4x1x32xf32, #tpu.memory_space<vmem>>, vector<1x1x32xf32>
    %20 = vector.shape_cast %19 : vector<1x1x32xf32> to vector<1x32xf32>
    %21 = vector.broadcast %20 : vector<1x32xf32> to vector<8x32xf32>
    %22 = arith.addf %18, %21 : vector<8x32xf32>
    %23 = vector.shape_cast %22 : vector<8x32xf32> to vector<1x8x32xf32>
    %c0_24 = arith.constant 0 : index
    %c0_25 = arith.constant 0 : index
    %c0_26 = arith.constant 0 : index
    %24 = vector.load %arg7[%c0_24, %c0_25, %c0_26] : memref<4x32x32xf32, #tpu.memory_space<vmem>>, vector<1x32x32xf32>
    %25 = vector.shape_cast %24 : vector<1x32x32xf32> to vector<32x32xf32>
    %cst_27 = arith.constant dense<0.000000e+00> : vector<8x32xf32>
    %26 = tpu.matmul %3, %25, %cst_27 {dimension_numbers = #tpu.dot_dimension_numbers<[1], [0], [0], [1], [0, 0, 1, 1], [], []>} : vector<8x32xf32>, vector<32x32xf32>, vector<8x32xf32> -> vector<8x32xf32>
    %c0_28 = arith.constant 0 : index
    %c0_29 = arith.constant 0 : index
    %c0_30 = arith.constant 0 : index
    %27 = vector.load %arg8[%c0_28, %c0_29, %c0_30] : memref<4x1x32xf32, #tpu.memory_space<vmem>>, vector<1x1x32xf32>
    %28 = vector.shape_cast %27 : vector<1x1x32xf32> to vector<1x32xf32>
    %29 = vector.broadcast %28 : vector<1x32xf32> to vector<8x32xf32>
    %30 = arith.addf %26, %29 : vector<8x32xf32>
    %31 = vector.shape_cast %30 : vector<8x32xf32> to vector<1x8x32xf32>
    "tpu.trace_start"() <{level = 10 : i32, message = "bqd,bkd->bqk"}> : () -> ()
    %cst_31 = arith.constant dense<0.000000e+00> : vector<1x8x8xf32>
    %32 = tpu.matmul %23, %31, %cst_31 {dimension_numbers = #tpu.dot_dimension_numbers<[2], [2], [1], [1], [0, 0, 0, 1, 1, 1], [0], [0]>} : vector<1x8x32xf32>, vector<1x8x32xf32>, vector<1x8x8xf32> -> vector<1x8x8xf32>
    %cst_32 = arith.constant -1.000000e+09 : f32
    "tpu.trace_stop"() : () -> ()
    %33 = vector.broadcast %cst_32 : f32 to vector<1x8x8xf32>
    %34 = arith.select %14, %33, %32 : vector<1x8x8xi1>, vector<1x8x8xf32>
    %cst_33 = arith.constant dense<0xFF800000> : vector<1x8xf32>
    %35 = vector.multi_reduction <maximumf>, %34, %cst_33 [2] : vector<1x8x8xf32> to vector<1x8xf32>
    %36 = vector.shape_cast %35 : vector<1x8xf32> to vector<1x8x1xf32>
    %37 = vector.broadcast %36 : vector<1x8x1xf32> to vector<1x8x8xf32>
    %38 = arith.subf %34, %37 : vector<1x8x8xf32>
    %39 = math.exp %38 : vector<1x8x8xf32>
    %cst_34 = arith.constant dense<0.000000e+00> : vector<1x8xf32>
    %40 = vector.multi_reduction <add>, %39, %cst_34 [2] : vector<1x8x8xf32> to vector<1x8xf32>
    %41 = vector.shape_cast %40 : vector<1x8xf32> to vector<1x8x1xf32>
    %42 = tpu.reciprocal %41 {approx = true} : vector<1x8x1xf32> -> vector<1x8x1xf32>
    %43 = vector.broadcast %42 : vector<1x8x1xf32> to vector<1x8x8xf32>
    %44 = arith.mulf %39, %43 : vector<1x8x8xf32>
    %45 = arith.addf %15, %44 : vector<1x8x8xf32>
    %c1 = arith.constant 1 : index
    %c0_35 = arith.constant 0 : index
    %c0_36 = arith.constant 0 : index
    %46 = vector.load %arg5[%c1, %c0_35, %c0_36] : memref<4x32x32xf32, #tpu.memory_space<vmem>>, vector<1x32x32xf32>
    %47 = vector.shape_cast %46 : vector<1x32x32xf32> to vector<32x32xf32>
    %cst_37 = arith.constant dense<0.000000e+00> : vector<8x32xf32>
    %48 = tpu.matmul %1, %47, %cst_37 {dimension_numbers = #tpu.dot_dimension_numbers<[1], [0], [0], [1], [0, 0, 1, 1], [], []>} : vector<8x32xf32>, vector<32x32xf32>, vector<8x32xf32> -> vector<8x32xf32>
    %c1_38 = arith.constant 1 : index
    %c0_39 = arith.constant 0 : index
    %c0_40 = arith.constant 0 : index
    %49 = vector.load %arg6[%c1_38, %c0_39, %c0_40] : memref<4x1x32xf32, #tpu.memory_space<vmem>>, vector<1x1x32xf32>
    %50 = vector.shape_cast %49 : vector<1x1x32xf32> to vector<1x32xf32>
    %51 = vector.broadcast %50 : vector<1x32xf32> to vector<8x32xf32>
    %52 = arith.addf %48, %51 : vector<8x32xf32>
    %53 = vector.shape_cast %52 : vector<8x32xf32> to vector<1x8x32xf32>
    %c1_41 = arith.constant 1 : index
    %c0_42 = arith.constant 0 : index
    %c0_43 = arith.constant 0 : index
    %54 = vector.load %arg7[%c1_41, %c0_42, %c0_43] : memref<4x32x32xf32, #tpu.memory_space<vmem>>, vector<1x32x32xf32>
    %55 = vector.shape_cast %54 : vector<1x32x32xf32> to vector<32x32xf32>
    %cst_44 = arith.constant dense<0.000000e+00> : vector<8x32xf32>
    %56 = tpu.matmul %3, %55, %cst_44 {dimension_numbers = #tpu.dot_dimension_numbers<[1], [0], [0], [1], [0, 0, 1, 1], [], []>} : vector<8x32xf32>, vector<32x32xf32>, vector<8x32xf32> -> vector<8x32xf32>
    %c1_45 = arith.constant 1 : index
    %c0_46 = arith.constant 0 : index
    %c0_47 = arith.constant 0 : index
    %57 = vector.load %arg8[%c1_45, %c0_46, %c0_47] : memref<4x1x32xf32, #tpu.memory_space<vmem>>, vector<1x1x32xf32>
    %58 = vector.shape_cast %57 : vector<1x1x32xf32> to vector<1x32xf32>
    %59 = vector.broadcast %58 : vector<1x32xf32> to vector<8x32xf32>
    %60 = arith.addf %56, %59 : vector<8x32xf32>
    %61 = vector.shape_cast %60 : vector<8x32xf32> to vector<1x8x32xf32>
    "tpu.trace_start"() <{level = 10 : i32, message = "bqd,bkd->bqk"}> : () -> ()
    %cst_48 = arith.constant dense<0.000000e+00> : vector<1x8x8xf32>
    %62 = tpu.matmul %53, %61, %cst_48 {dimension_numbers = #tpu.dot_dimension_numbers<[2], [2], [1], [1], [0, 0, 0, 1, 1, 1], [0], [0]>} : vector<1x8x32xf32>, vector<1x8x32xf32>, vector<1x8x8xf32> -> vector<1x8x8xf32>
    %cst_49 = arith.constant -1.000000e+09 : f32
    "tpu.trace_stop"() : () -> ()
    %63 = vector.broadcast %cst_49 : f32 to vector<1x8x8xf32>
    %64 = arith.select %14, %63, %62 : vector<1x8x8xi1>, vector<1x8x8xf32>
    %cst_50 = arith.constant dense<0xFF800000> : vector<1x8xf32>
    %65 = vector.multi_reduction <maximumf>, %64, %cst_50 [2] : vector<1x8x8xf32> to vector<1x8xf32>
    %66 = vector.shape_cast %65 : vector<1x8xf32> to vector<1x8x1xf32>
    %67 = vector.broadcast %66 : vector<1x8x1xf32> to vector<1x8x8xf32>
    %68 = arith.subf %64, %67 : vector<1x8x8xf32>
    %69 = math.exp %68 : vector<1x8x8xf32>
    %cst_51 = arith.constant dense<0.000000e+00> : vector<1x8xf32>
    %70 = vector.multi_reduction <add>, %69, %cst_51 [2] : vector<1x8x8xf32> to vector<1x8xf32>
    %71 = vector.shape_cast %70 : vector<1x8xf32> to vector<1x8x1xf32>
    %72 = tpu.reciprocal %71 {approx = true} : vector<1x8x1xf32> -> vector<1x8x1xf32>
    %73 = vector.broadcast %72 : vector<1x8x1xf32> to vector<1x8x8xf32>
    %74 = arith.mulf %69, %73 : vector<1x8x8xf32>
    %75 = arith.addf %45, %74 : vector<1x8x8xf32>
    %c2 = arith.constant 2 : index
    %c0_52 = arith.constant 0 : index
    %c0_53 = arith.constant 0 : index
    %76 = vector.load %arg5[%c2, %c0_52, %c0_53] : memref<4x32x32xf32, #tpu.memory_space<vmem>>, vector<1x32x32xf32>
    %77 = vector.shape_cast %76 : vector<1x32x32xf32> to vector<32x32xf32>
    %cst_54 = arith.constant dense<0.000000e+00> : vector<8x32xf32>
    %78 = tpu.matmul %1, %77, %cst_54 {dimension_numbers = #tpu.dot_dimension_numbers<[1], [0], [0], [1], [0, 0, 1, 1], [], []>} : vector<8x32xf32>, vector<32x32xf32>, vector<8x32xf32> -> vector<8x32xf32>
    %c2_55 = arith.constant 2 : index
    %c0_56 = arith.constant 0 : index
    %c0_57 = arith.constant 0 : index
    %79 = vector.load %arg6[%c2_55, %c0_56, %c0_57] : memref<4x1x32xf32, #tpu.memory_space<vmem>>, vector<1x1x32xf32>
    %80 = vector.shape_cast %79 : vector<1x1x32xf32> to vector<1x32xf32>
    %81 = vector.broadcast %80 : vector<1x32xf32> to vector<8x32xf32>
    %82 = arith.addf %78, %81 : vector<8x32xf32>
    %83 = vector.shape_cast %82 : vector<8x32xf32> to vector<1x8x32xf32>
    %c2_58 = arith.constant 2 : index
    %c0_59 = arith.constant 0 : index
    %c0_60 = arith.constant 0 : index
    %84 = vector.load %arg7[%c2_58, %c0_59, %c0_60] : memref<4x32x32xf32, #tpu.memory_space<vmem>>, vector<1x32x32xf32>
    %85 = vector.shape_cast %84 : vector<1x32x32xf32> to vector<32x32xf32>
    %cst_61 = arith.constant dense<0.000000e+00> : vector<8x32xf32>
    %86 = tpu.matmul %3, %85, %cst_61 {dimension_numbers = #tpu.dot_dimension_numbers<[1], [0], [0], [1], [0, 0, 1, 1], [], []>} : vector<8x32xf32>, vector<32x32xf32>, vector<8x32xf32> -> vector<8x32xf32>
    %c2_62 = arith.constant 2 : index
    %c0_63 = arith.constant 0 : index
    %c0_64 = arith.constant 0 : index
    %87 = vector.load %arg8[%c2_62, %c0_63, %c0_64] : memref<4x1x32xf32, #tpu.memory_space<vmem>>, vector<1x1x32xf32>
    %88 = vector.shape_cast %87 : vector<1x1x32xf32> to vector<1x32xf32>
    %89 = vector.broadcast %88 : vector<1x32xf32> to vector<8x32xf32>
    %90 = arith.addf %86, %89 : vector<8x32xf32>
    %91 = vector.shape_cast %90 : vector<8x32xf32> to vector<1x8x32xf32>
    "tpu.trace_start"() <{level = 10 : i32, message = "bqd,bkd->bqk"}> : () -> ()
    %cst_65 = arith.constant dense<0.000000e+00> : vector<1x8x8xf32>
    %92 = tpu.matmul %83, %91, %cst_65 {dimension_numbers = #tpu.dot_dimension_numbers<[2], [2], [1], [1], [0, 0, 0, 1, 1, 1], [0], [0]>} : vector<1x8x32xf32>, vector<1x8x32xf32>, vector<1x8x8xf32> -> vector<1x8x8xf32>
    %cst_66 = arith.constant -1.000000e+09 : f32
    "tpu.trace_stop"() : () -> ()
    %93 = vector.broadcast %cst_66 : f32 to vector<1x8x8xf32>
    %94 = arith.select %14, %93, %92 : vector<1x8x8xi1>, vector<1x8x8xf32>
    %cst_67 = arith.constant dense<0xFF800000> : vector<1x8xf32>
    %95 = vector.multi_reduction <maximumf>, %94, %cst_67 [2] : vector<1x8x8xf32> to vector<1x8xf32>
    %96 = vector.shape_cast %95 : vector<1x8xf32> to vector<1x8x1xf32>
    %97 = vector.broadcast %96 : vector<1x8x1xf32> to vector<1x8x8xf32>
    %98 = arith.subf %94, %97 : vector<1x8x8xf32>
    %99 = math.exp %98 : vector<1x8x8xf32>
    %cst_68 = arith.constant dense<0.000000e+00> : vector<1x8xf32>
    %100 = vector.multi_reduction <add>, %99, %cst_68 [2] : vector<1x8x8xf32> to vector<1x8xf32>
    %101 = vector.shape_cast %100 : vector<1x8xf32> to vector<1x8x1xf32>
    %102 = tpu.reciprocal %101 {approx = true} : vector<1x8x1xf32> -> vector<1x8x1xf32>
    %103 = vector.broadcast %102 : vector<1x8x1xf32> to vector<1x8x8xf32>
    %104 = arith.mulf %99, %103 : vector<1x8x8xf32>
    %105 = arith.addf %75, %104 : vector<1x8x8xf32>
    %c3 = arith.constant 3 : index
    %c0_69 = arith.constant 0 : index
    %c0_70 = arith.constant 0 : index
    %106 = vector.load %arg5[%c3, %c0_69, %c0_70] : memref<4x32x32xf32, #tpu.memory_space<vmem>>, vector<1x32x32xf32>
    %107 = vector.shape_cast %106 : vector<1x32x32xf32> to vector<32x32xf32>
    %cst_71 = arith.constant dense<0.000000e+00> : vector<8x32xf32>
    %108 = tpu.matmul %1, %107, %cst_71 {dimension_numbers = #tpu.dot_dimension_numbers<[1], [0], [0], [1], [0, 0, 1, 1], [], []>} : vector<8x32xf32>, vector<32x32xf32>, vector<8x32xf32> -> vector<8x32xf32>
    %c3_72 = arith.constant 3 : index
    %c0_73 = arith.constant 0 : index
    %c0_74 = arith.constant 0 : index
    %109 = vector.load %arg6[%c3_72, %c0_73, %c0_74] : memref<4x1x32xf32, #tpu.memory_space<vmem>>, vector<1x1x32xf32>
    %110 = vector.shape_cast %109 : vector<1x1x32xf32> to vector<1x32xf32>
    %111 = vector.broadcast %110 : vector<1x32xf32> to vector<8x32xf32>
    %112 = arith.addf %108, %111 : vector<8x32xf32>
    %113 = vector.shape_cast %112 : vector<8x32xf32> to vector<1x8x32xf32>
    %c3_75 = arith.constant 3 : index
    %c0_76 = arith.constant 0 : index
    %c0_77 = arith.constant 0 : index
    %114 = vector.load %arg7[%c3_75, %c0_76, %c0_77] : memref<4x32x32xf32, #tpu.memory_space<vmem>>, vector<1x32x32xf32>
    %115 = vector.shape_cast %114 : vector<1x32x32xf32> to vector<32x32xf32>
    %cst_78 = arith.constant dense<0.000000e+00> : vector<8x32xf32>
    %116 = tpu.matmul %3, %115, %cst_78 {dimension_numbers = #tpu.dot_dimension_numbers<[1], [0], [0], [1], [0, 0, 1, 1], [], []>} : vector<8x32xf32>, vector<32x32xf32>, vector<8x32xf32> -> vector<8x32xf32>
    %c3_79 = arith.constant 3 : index
    %c0_80 = arith.constant 0 : index
    %c0_81 = arith.constant 0 : index
    %117 = vector.load %arg8[%c3_79, %c0_80, %c0_81] : memref<4x1x32xf32, #tpu.memory_space<vmem>>, vector<1x1x32xf32>
    %118 = vector.shape_cast %117 : vector<1x1x32xf32> to vector<1x32xf32>
    %119 = vector.broadcast %118 : vector<1x32xf32> to vector<8x32xf32>
    %120 = arith.addf %116, %119 : vector<8x32xf32>
    %121 = vector.shape_cast %120 : vector<8x32xf32> to vector<1x8x32xf32>
    "tpu.trace_start"() <{level = 10 : i32, message = "bqd,bkd->bqk"}> : () -> ()
    %cst_82 = arith.constant dense<0.000000e+00> : vector<1x8x8xf32>
    %122 = tpu.matmul %113, %121, %cst_82 {dimension_numbers = #tpu.dot_dimension_numbers<[2], [2], [1], [1], [0, 0, 0, 1, 1, 1], [0], [0]>} : vector<1x8x32xf32>, vector<1x8x32xf32>, vector<1x8x8xf32> -> vector<1x8x8xf32>
    %cst_83 = arith.constant -1.000000e+09 : f32
    "tpu.trace_stop"() : () -> ()
    %123 = vector.broadcast %cst_83 : f32 to vector<1x8x8xf32>
    %124 = arith.select %14, %123, %122 : vector<1x8x8xi1>, vector<1x8x8xf32>
    %cst_84 = arith.constant dense<0xFF800000> : vector<1x8xf32>
    %125 = vector.multi_reduction <maximumf>, %124, %cst_84 [2] : vector<1x8x8xf32> to vector<1x8xf32>
    %126 = vector.shape_cast %125 : vector<1x8xf32> to vector<1x8x1xf32>
    %127 = vector.broadcast %126 : vector<1x8x1xf32> to vector<1x8x8xf32>
    %128 = arith.subf %124, %127 : vector<1x8x8xf32>
    %129 = math.exp %128 : vector<1x8x8xf32>
    %cst_85 = arith.constant dense<0.000000e+00> : vector<1x8xf32>
    %130 = vector.multi_reduction <add>, %129, %cst_85 [2] : vector<1x8x8xf32> to vector<1x8xf32>
    %131 = vector.shape_cast %130 : vector<1x8xf32> to vector<1x8x1xf32>
    %132 = tpu.reciprocal %131 {approx = true} : vector<1x8x1xf32> -> vector<1x8x1xf32>
    %133 = vector.broadcast %132 : vector<1x8x1xf32> to vector<1x8x8xf32>
    %134 = arith.mulf %129, %133 : vector<1x8x8xf32>
    %135 = arith.addf %105, %134 : vector<1x8x8xf32>
    %cst_86 = arith.constant 2.500000e-01 : f32
    %136 = vector.broadcast %cst_86 : f32 to vector<1x8x8xf32>
    %137 = arith.mulf %135, %136 : vector<1x8x8xf32>
    "tpu.trace_start"() <{level = 10 : i32, message = "bqk,bkd->bqd"}> : () -> ()
    %cst_87 = arith.constant dense<0.000000e+00> : vector<1x8x32xf32>
    %138 = tpu.matmul %137, %11, %cst_87 {dimension_numbers = #tpu.dot_dimension_numbers<[2], [1], [1], [2], [0, 0, 0, 1, 1, 2], [0], [0]>} : vector<1x8x8xf32>, vector<1x8x32xf32>, vector<1x8x32xf32> -> vector<1x8x32xf32>
    "tpu.trace_stop"() : () -> ()
    %139 = vector.shape_cast %138 : vector<1x8x32xf32> to vector<8x32xf32>
    %c0_88 = arith.constant 0 : index
    %c0_89 = arith.constant 0 : index
    %140 = vector.load %arg11[%c0_88, %c0_89] : memref<32x32xf32, #tpu.memory_space<vmem>>, vector<32x32xf32>
    %cst_90 = arith.constant dense<0.000000e+00> : vector<8x32xf32>
    %141 = tpu.matmul %139, %140, %cst_90 {dimension_numbers = #tpu.dot_dimension_numbers<[1], [0], [0], [1], [0, 0, 1, 1], [], []>} : vector<8x32xf32>, vector<32x32xf32>, vector<8x32xf32> -> vector<8x32xf32>
    %c0_91 = arith.constant 0 : index
    %c0_92 = arith.constant 0 : index
    %142 = vector.load %arg12[%c0_91, %c0_92] : memref<1x32xf32, #tpu.memory_space<vmem>>, vector<1x32xf32>
    %143 = vector.broadcast %142 : vector<1x32xf32> to vector<8x32xf32>
    %144 = arith.addf %141, %143 : vector<8x32xf32>
    %145 = vector.shape_cast %144 : vector<8x32xf32> to vector<1x8x32xf32>
    %c0_93 = arith.constant 0 : index
    %c0_94 = arith.constant 0 : index
    %c0_95 = arith.constant 0 : index
    %146 = vector.load %arg13[%c0_93, %c0_94, %c0_95] : memref<1x8x32xf32, #tpu.memory_space<vmem>>, vector<1x8x32xf32>
    tpu.vector_store %arg13[%c0_93, %c0_94, %c0_95], %145 {strides = array<i32>} : memref<1x8x32xf32, #tpu.memory_space<vmem>>, vector<1x8x32xf32>,
    %c0_96 = arith.constant 0 : index
    %c0_97 = arith.constant 0 : index
    %c0_98 = arith.constant 0 : index
    %147 = vector.load %arg14[%c0_96, %c0_97, %c0_98] : memref<1x8x32xf32, #tpu.memory_space<vmem>>, vector<1x8x32xf32>
    tpu.vector_store %arg14[%c0_96, %c0_97, %c0_98], %138 {strides = array<i32>} : memref<1x8x32xf32, #tpu.memory_space<vmem>>, vector<1x8x32xf32>,
    %c0_99 = arith.constant 0 : index
    %c0_100 = arith.constant 0 : index
    %c0_101 = arith.constant 0 : index
    %148 = vector.load %arg15[%c0_99, %c0_100, %c0_101] : memref<1x8x8xf32, #tpu.memory_space<vmem>>, vector<1x8x8xf32>
    tpu.vector_store %arg15[%c0_99, %c0_100, %c0_101], %137 {strides = array<i32>} : memref<1x8x8xf32, #tpu.memory_space<vmem>>, vector<1x8x8xf32>,
    return
  }
  func.func @transform_0(%arg0: i32) -> (i32, i32, i32) {
    %c0_i32 = arith.constant 0 : i32
    %c0_i32_0 = arith.constant 0 : i32
    %c0_i32_1 = arith.constant 0 : i32
    return %arg0, %c0_i32, %c0_i32_0 : i32, i32, i32
  }
  func.func @transform_1(%arg0: i32) -> (i32, i32, i32) {
    %c0_i32 = arith.constant 0 : i32
    %c0_i32_0 = arith.constant 0 : i32
    %c0_i32_1 = arith.constant 0 : i32
    return %arg0, %c0_i32, %c0_i32_0 : i32, i32, i32
  }
  func.func @transform_2(%arg0: i32) -> (i32, i32, i32) {
    %c0_i32 = arith.constant 0 : i32
    %c0_i32_0 = arith.constant 0 : i32
    %c0_i32_1 = arith.constant 0 : i32
    return %arg0, %c0_i32, %c0_i32_0 : i32, i32, i32
  }
  func.func @transform_3(%arg0: i32) -> (i32, i32, i32) {
    %c0_i32 = arith.constant 0 : i32
    %c0_i32_0 = arith.constant 0 : i32
    %c0_i32_1 = arith.constant 0 : i32
    %c0_i32_2 = arith.constant 0 : i32
    return %c0_i32, %c0_i32_0, %c0_i32_1 : i32, i32, i32
  }
  func.func @transform_4(%arg0: i32) -> (i32, i32, i32) {
    %c0_i32 = arith.constant 0 : i32
    %c0_i32_0 = arith.constant 0 : i32
    %c0_i32_1 = arith.constant 0 : i32
    %c0_i32_2 = arith.constant 0 : i32
    return %c0_i32, %c0_i32_0, %c0_i32_1 : i32, i32, i32
  }
  func.func @transform_5(%arg0: i32) -> (i32, i32, i32) {
    %c0_i32 = arith.constant 0 : i32
    %c0_i32_0 = arith.constant 0 : i32
    %c0_i32_1 = arith.constant 0 : i32
    %c0_i32_2 = arith.constant 0 : i32
    return %c0_i32, %c0_i32_0, %c0_i32_1 : i32, i32, i32
  }
  func.func @transform_6(%arg0: i32) -> (i32, i32, i32) {
    %c0_i32 = arith.constant 0 : i32
    %c0_i32_0 = arith.constant 0 : i32
    %c0_i32_1 = arith.constant 0 : i32
    %c0_i32_2 = arith.constant 0 : i32
    return %c0_i32, %c0_i32_0, %c0_i32_1 : i32, i32, i32
  }
  func.func @transform_7(%arg0: i32) -> (i32, i32, i32) {
    %c0_i32 = arith.constant 0 : i32
    %c0_i32_0 = arith.constant 0 : i32
    %c0_i32_1 = arith.constant 0 : i32
    %c0_i32_2 = arith.constant 0 : i32
    return %c0_i32, %c0_i32_0, %c0_i32_1 : i32, i32, i32
  }
  func.func @transform_8(%arg0: i32) -> (i32, i32) {
    %c0_i32 = arith.constant 0 : i32
    %c0_i32_0 = arith.constant 0 : i32
    %c0_i32_1 = arith.constant 0 : i32
    return %c0_i32, %c0_i32_0 : i32, i32
  }
  func.func @transform_9(%arg0: i32) -> (i32, i32) {
    %c0_i32 = arith.constant 0 : i32
    %c0_i32_0 = arith.constant 0 : i32
    %c0_i32_1 = arith.constant 0 : i32
    return %c0_i32, %c0_i32_0 : i32, i32
  }
  func.func @transform_10(%arg0: i32) -> (i32, i32) {
    %c0_i32 = arith.constant 0 : i32
    %c0_i32_0 = arith.constant 0 : i32
    %c0_i32_1 = arith.constant 0 : i32
    return %c0_i32, %c0_i32_0 : i32, i32
  }
  func.func @transform_11(%arg0: i32) -> (i32, i32) {
    %c0_i32 = arith.constant 0 : i32
    %c0_i32_0 = arith.constant 0 : i32
    %c0_i32_1 = arith.constant 0 : i32
    return %c0_i32, %c0_i32_0 : i32, i32
  }
  func.func @transform_12(%arg0: i32) -> (i32, i32, i32) {
    %c0_i32 = arith.constant 0 : i32
    %c0_i32_0 = arith.constant 0 : i32
    %c0_i32_1 = arith.constant 0 : i32
    return %arg0, %c0_i32, %c0_i32_0 : i32, i32, i32
  }
  func.func @transform_13(%arg0: i32) -> (i32, i32, i32) {
    %c0_i32 = arith.constant 0 : i32
    %c0_i32_0 = arith.constant 0 : i32
    %c0_i32_1 = arith.constant 0 : i32
    return %arg0, %c0_i32, %c0_i32_0 : i32, i32, i32
  }
  func.func @transform_14(%arg0: i32) -> (i32, i32, i32) {
    %c0_i32 = arith.constant 0 : i32
    %c0_i32_0 = arith.constant 0 : i32
    %c0_i32_1 = arith.constant 0 : i32
    return %arg0, %c0_i32, %c0_i32_0 : i32, i32, i32
  }
}

</mosaic_0001>

<llo_original>
// kernel: tpu_custom_call.1
$region0: #{tpu_custom_call.1}
  #allocation0 [shape = 'u32[]', space=smem, size = 0x4, offset = 0x4, fixed_abs, tag = 'smem constant byte address 0x4 - core index']
  #allocation1 [shape = 'u32[72,128]{1,0:T(1,128)}', space=vmem, size = 0x9000, scoped, tag = 'internal scratch']
  %s0 = inlined_call_operand.hbm [shape: f32[2,8,32], index: 0, kind: input, shape index: {}]
  %s1 = inlined_call_operand.hbm [shape: f32[2,8,32], index: 1, kind: input, shape index: {}]
  %s2 = inlined_call_operand.hbm [shape: f32[2,8,32], index: 2, kind: input, shape index: {}]
  %s3 = inlined_call_operand.hbm [shape: f32[1,8,8], index: 3, kind: input, shape index: {}]
  %s4 = inlined_call_operand.hbm [shape: f32[4,32,32], index: 4, kind: input, shape index: {}]
  %s5 = inlined_call_operand.vmem [shape: f32[4,1,32], index: 5, kind: input, shape index: {}]
  %s6 = inlined_call_operand.hbm [shape: f32[4,32,32], index: 6, kind: input, shape index: {}]
  %s7 = inlined_call_operand.hbm [shape: f32[4,1,32], index: 7, kind: input, shape index: {}]
  %s8 = inlined_call_operand.hbm [shape: f32[32,32], index: 8, kind: input, shape index: {}]
  %s9 = inlined_call_operand.vmem [shape: f32[1,32], index: 9, kind: input, shape index: {}]
  %s10 = inlined_call_operand.hbm [shape: f32[32,32], index: 10, kind: input, shape index: {}]
  %s11 = inlined_call_operand.vmem [shape: f32[1,32], index: 11, kind: input, shape index: {}]
  %s12 = inlined_call_operand.hbm [shape: f32[2,8,32], index: 12, kind: output, shape index: {0}]
  %s13 = inlined_call_operand.hbm [shape: f32[2,8,32], index: 13, kind: output, shape index: {1}]
  %s14 = inlined_call_operand.hbm [shape: f32[2,8,8], index: 14, kind: output, shape index: {2}]
  %15 = xla_tuple %s12, %s13, %s14
  %s16 = sld [smem:[#allocation0]]
  $region133: #{tpu_custom_call.1} parent=0
    _
  %s18 = ssub.s32 1, %s16
  %s19 = scalar_select 0, %s18, %s16
  $region1: #{tpu_custom_call.1} parent=0
    #allocation2 [shape = 'u8[8192]{0}', space=vmem, size = 0x2000, scoped, tag = 'input window, operand 0']
    #allocation3 [shape = 's32[2]{0}', space=sflag, size = 0x8, scoped, tag = 'scoped memory for tpu_custom_call.1']
    #allocation4 [shape = 's32[2]{0}', space=sflag, size = 0x8, scoped, tag = 'scoped memory for tpu_custom_call.1']
    #allocation5 [shape = 'u8[8192]{0}', space=vmem, size = 0x2000, scoped, tag = 'input window, operand 1']
    #allocation6 [shape = 's32[2]{0}', space=sflag, size = 0x8, scoped, tag = 'scoped memory for tpu_custom_call.1']
    #allocation7 [shape = 'u8[8192]{0}', space=vmem, size = 0x2000, scoped, tag = 'input window, operand 2']
    #allocation8 [shape = 'u8[4096]{0}', space=vmem, size = 0x1000, scoped, tag = 'input window, operand 3, single buffered']
    #allocation9 [shape = 's32[1]{0}', space=sflag, size = 0x4, scoped, tag = 'scoped memory for tpu_custom_call.1']
    #allocation10 [shape = 'u8[65536]{0}', space=vmem, size = 0x10000, scoped, tag = 'input window, operand 4, single buffered']
    #allocation11 [shape = 'u8[65536]{0}', space=vmem, size = 0x10000, scoped, tag = 'input window, operand 6, single buffered']
    #allocation12 [shape = 's32[1]{0}', space=sflag, size = 0x4, scoped, tag = 'scoped memory for tpu_custom_call.1']
    #allocation13 [shape = 'u8[2048]{0}', space=vmem, size = 0x800, scoped, tag = 'input window, operand 7, single buffered']
    #allocation14 [shape = 'u8[16384]{0}', space=vmem, size = 0x4000, scoped, tag = 'input window, operand 8, single buffered']
    #allocation15 [shape = 's32[1]{0}', space=sflag, size = 0x4, scoped, tag = 'scoped memory for tpu_custom_call.1']
    #allocation16 [shape = 'u8[16384]{0}', space=vmem, size = 0x4000, scoped, tag = 'input window, operand 10, single buffered']
    #allocation17 [shape = 'u8[8192]{0}', space=vmem, size = 0x2000, scoped, tag = 'output window, operand 0']
    #allocation18 [shape = 'u8[8192]{0}', space=vmem, size = 0x2000, scoped, tag = 'output window, operand 1']
    #allocation19 [shape = 's32[2]{0}', space=sflag, size = 0x8, scoped, tag = 'scoped memory for tpu_custom_call.1']
    #allocation20 [shape = 'u8[8192]{0}', space=vmem, size = 0x2000, scoped, tag = 'output window, operand 2']
    %20 = vsyncpa [#allocation3], 0
    %s21 = scalar_lea.sflag [#allocation3], 1
    %22 = vsyncpa %s21, 0
    %23 = vsyncpa [#allocation6], 0
    %s24 = scalar_lea.sflag [#allocation6], 1
    %25 = vsyncpa %s24, 0
    %26 = vsyncpa [#allocation9], 0
    %27 = vsyncpa [#allocation12], 0
    %28 = vsyncpa [#allocation15], 0
    %29 = vsyncpa [#allocation4], 0
    %s30 = scalar_lea.sflag [#allocation4], 1
    %31 = vsyncpa %s30, 0
    %32 = vsyncpa [#allocation19], 0
    %s33 = scalar_lea.sflag [#allocation19], 1
    %34 = vsyncpa %s33, 0
    loop: start=0, step=1, limit=4
    $region2: #{tpu_custom_call.1} parent=1 // loop_pre_header
      _
    $region3: #{tpu_custom_call.1} parent=1 // loop_header
      %s36 = sphi 0, %s40
      %p37 = scmp.ge.s32.totalorder %s36, 4
      %s46 = sphi 0, %s48
      %s49 = sphi 0, %s46
      %s50 = sphi 0, %s49
      %s66 = sphi 0, %s50
      %s72 = sphi 0, %s74
      %s75 = sphi 0, %s72
      %s76 = sphi 0, %s75
      %s92 = sphi 0, %s76
      %s98 = sphi 0, %s100
      %s101 = sphi 0, %s98
      %s102 = sphi 0, %s101
      %s118 = sphi 0, %s102
      %s122 = sphi 0, %s122
      %s124 = sphi 0, %s122
      %s125 = sphi 0, %s124
      %s139 = sphi 0, %s125
      %s143 = sphi 0, %s143
      %s145 = sphi 0, %s143
      %s146 = sphi 0, %s145
      %s160 = sphi 0, %s146
      %s164 = sphi 0, %s164
      %s166 = sphi 0, %s164
      %s167 = sphi 0, %s166
      %s181 = sphi 0, %s167
      %s185 = sphi 0, %s185
      %s187 = sphi 0, %s185
      %s188 = sphi 0, %s187
      %s202 = sphi 0, %s188
      %s206 = sphi 0, %s206
      %s208 = sphi 0, %s206
      %s209 = sphi 0, %s208
      %s223 = sphi 0, %s209
      %s227 = sphi 0, %s227
      %s229 = sphi 0, %s227
      %s230 = sphi 0, %s229
      %s244 = sphi 0, %s230
      %s248 = sphi 0, %s248
      %s250 = sphi 0, %s248
      %s251 = sphi 0, %s250
      %s265 = sphi 0, %s251
      %s269 = sphi 0, %s269
      %s271 = sphi 0, %s269
      %s272 = sphi 0, %s271
      %s286 = sphi 0, %s272
      %s290 = sphi 0, %s290
      %s292 = sphi 0, %s290
      %s293 = sphi 0, %s292
      %s307 = sphi 0, %s293
      %s313 = sphi 0, %s315
      %s316 = sphi 0, %s313
      %s317 = sphi 0, %s316
      %s333 = sphi 0, %s317
      %s339 = sphi 0, %s341
      %s342 = sphi 0, %s339
      %s343 = sphi 0, %s342
      %s359 = sphi 0, %s343
      %s365 = sphi 0, %s367
      %s368 = sphi 0, %s365
      %s369 = sphi 0, %s368
      %s385 = sphi 0, %s369
    $region4: #{tpu_custom_call.1} parent=1 // loop_header_branch
      %39 = sbr.rel (%p37) target = $region8
    $region5: #{tpu_custom_call.1} parent=1 // loop_body
      %s41 = ssub.s32 %s36, 1
      %s42 = ssub.s32 %s36, 2
      %s43 = sadd.s32 %s36, 1
      %s44 = ssub.s32 %s36, %s43
      %p45 = scmp.eq.s32.totalorder %s44, 0
      %s47 = sadd.s32 %s46, 1
      %s48 = scalar_select %p45, %s46, %s47
      %p51 = pneg %p45
      %p52 = scmp.eq.s32.totalorder %s36, 1
      %p53 = por %p51, %p52
      %p54 = scmp.ne.s32.totalorder %s46, %s49
      %p55 = scmp.eq.s32.totalorder %s36, 0
      %p56 = por %p54, %p55
      %p57 = scmp.ne.s32.totalorder %s46, %s49
      %p58 = scmp.eq.s32.totalorder %s41, 1
      %p59 = por %p57, %p58
      %p60 = scmp.ne.s32.totalorder %s49, %s50
      %p61 = scmp.eq.s32.totalorder %s41, 0
      %p62 = por %p60, %p61
      %p63 = scmp.ne.s32.totalorder %s49, %s50
      %p64 = scmp.eq.s32.totalorder %s42, 1
      %p65 = por %p63, %p64
      %p67 = scmp.ne.s32.totalorder %s50, %s66
      %p68 = scmp.eq.s32.totalorder %s42, 0
      %p69 = por %p67, %p68
      %s70 = ssub.s32 %s36, %s43
      %p71 = scmp.eq.s32.totalorder %s70, 0
      %s73 = sadd.s32 %s72, 1
      %s74 = scalar_select %p71, %s72, %s73
      %p77 = pneg %p71
      %p78 = scmp.eq.s32.totalorder %s36, 1
      %p79 = por %p77, %p78
      %p80 = scmp.ne.s32.totalorder %s72, %s75
      %p81 = scmp.eq.s32.totalorder %s36, 0
      %p82 = por %p80, %p81
      %p83 = scmp.ne.s32.totalorder %s72, %s75
      %p84 = scmp.eq.s32.totalorder %s41, 1
      %p85 = por %p83, %p84
      %p86 = scmp.ne.s32.totalorder %s75, %s76
      %p87 = scmp.eq.s32.totalorder %s41, 0
      %p88 = por %p86, %p87
      %p89 = scmp.ne.s32.totalorder %s75, %s76
      %p90 = scmp.eq.s32.totalorder %s42, 1
      %p91 = por %p89, %p90
      %p93 = scmp.ne.s32.totalorder %s76, %s92
      %p94 = scmp.eq.s32.totalorder %s42, 0
      %p95 = por %p93, %p94
      %s96 = ssub.s32 %s36, %s43
      %p97 = scmp.eq.s32.totalorder %s96, 0
      %s99 = sadd.s32 %s98, 1
      %s100 = scalar_select %p97, %s98, %s99
      %p103 = pneg %p97
      %p104 = scmp.eq.s32.totalorder %s36, 1
      %p105 = por %p103, %p104
      %p106 = scmp.ne.s32.totalorder %s98, %s101
      %p107 = scmp.eq.s32.totalorder %s36, 0
      %p108 = por %p106, %p107
      %p109 = scmp.ne.s32.totalorder %s98, %s101
      %p110 = scmp.eq.s32.totalorder %s41, 1
      %p111 = por %p109, %p110
      %p112 = scmp.ne.s32.totalorder %s101, %s102
      %p113 = scmp.eq.s32.totalorder %s41, 0
      %p114 = por %p112, %p113
      %p115 = scmp.ne.s32.totalorder %s101, %s102
      %p116 = scmp.eq.s32.totalorder %s42, 1
      %p117 = por %p115, %p116
      %p119 = scmp.ne.s32.totalorder %s102, %s118
      %p120 = scmp.eq.s32.totalorder %s42, 0
      %p121 = por %p119, %p120
      %s123 = sadd.s32 %s122, 1
      %p126 = scmp.eq.s32.totalorder %s36, 1
      %p127 = scmp.ne.s32.totalorder %s122, %s124
      %p128 = scmp.eq.s32.totalorder %s36, 0
      %p129 = por %p127, %p128
      %p130 = scmp.ne.s32.totalorder %s122, %s124
      %p131 = scmp.eq.s32.totalorder %s41, 1
      %p132 = por %p130, %p131
      %p133 = scmp.ne.s32.totalorder %s124, %s125
      %p134 = scmp.eq.s32.totalorder %s41, 0
      %p135 = por %p133, %p134
      %p136 = scmp.ne.s32.totalorder %s124, %s125
      %p137 = scmp.eq.s32.totalorder %s42, 1
      %p138 = por %p136, %p137
      %p140 = scmp.ne.s32.totalorder %s125, %s139
      %p141 = scmp.eq.s32.totalorder %s42, 0
      %p142 = por %p140, %p141
      %s144 = sadd.s32 %s143, 1
      %p147 = scmp.eq.s32.totalorder %s36, 1
      %p148 = scmp.ne.s32.totalorder %s143, %s145
      %p149 = scmp.eq.s32.totalorder %s36, 0
      %p150 = por %p148, %p149
      %p151 = scmp.ne.s32.totalorder %s143, %s145
      %p152 = scmp.eq.s32.totalorder %s41, 1
      %p153 = por %p151, %p152
      %p154 = scmp.ne.s32.totalorder %s145, %s146
      %p155 = scmp.eq.s32.totalorder %s41, 0
      %p156 = por %p154, %p155
      %p157 = scmp.ne.s32.totalorder %s145, %s146
      %p158 = scmp.eq.s32.totalorder %s42, 1
      %p159 = por %p157, %p158
      %p161 = scmp.ne.s32.totalorder %s146, %s160
      %p162 = scmp.eq.s32.totalorder %s42, 0
      %p163 = por %p161, %p162
      %s165 = sadd.s32 %s164, 1
      %p168 = scmp.eq.s32.totalorder %s36, 1
      %p169 = scmp.ne.s32.totalorder %s164, %s166
      %p170 = scmp.eq.s32.totalorder %s36, 0
      %p171 = por %p169, %p170
      %p172 = scmp.ne.s32.totalorder %s164, %s166
      %p173 = scmp.eq.s32.totalorder %s41, 1
      %p174 = por %p172, %p173
      %p175 = scmp.ne.s32.totalorder %s166, %s167
      %p176 = scmp.eq.s32.totalorder %s41, 0
      %p177 = por %p175, %p176
      %p178 = scmp.ne.s32.totalorder %s166, %s167
      %p179 = scmp.eq.s32.totalorder %s42, 1
      %p180 = por %p178, %p179
      %p182 = scmp.ne.s32.totalorder %s167, %s181
      %p183 = scmp.eq.s32.totalorder %s42, 0
      %p184 = por %p182, %p183
      %s186 = sadd.s32 %s185, 1
      %p189 = scmp.eq.s32.totalorder %s36, 1
      %p190 = scmp.ne.s32.totalorder %s185, %s187
      %p191 = scmp.eq.s32.totalorder %s36, 0
      %p192 = por %p190, %p191
      %p193 = scmp.ne.s32.totalorder %s185, %s187
      %p194 = scmp.eq.s32.totalorder %s41, 1
      %p195 = por %p193, %p194
      %p196 = scmp.ne.s32.totalorder %s187, %s188
      %p197 = scmp.eq.s32.totalorder %s41, 0
      %p198 = por %p196, %p197
      %p199 = scmp.ne.s32.totalorder %s187, %s188
      %p200 = scmp.eq.s32.totalorder %s42, 1
      %p201 = por %p199, %p200
      %p203 = scmp.ne.s32.totalorder %s188, %s202
      %p204 = scmp.eq.s32.totalorder %s42, 0
      %p205 = por %p203, %p204
      %s207 = sadd.s32 %s206, 1
      %p210 = scmp.eq.s32.totalorder %s36, 1
      %p211 = scmp.ne.s32.totalorder %s206, %s208
      %p212 = scmp.eq.s32.totalorder %s36, 0
      %p213 = por %p211, %p212
      %p214 = scmp.ne.s32.totalorder %s206, %s208
      %p215 = scmp.eq.s32.totalorder %s41, 1
      %p216 = por %p214, %p215
      %p217 = scmp.ne.s32.totalorder %s208, %s209
      %p218 = scmp.eq.s32.totalorder %s41, 0
      %p219 = por %p217, %p218
      %p220 = scmp.ne.s32.totalorder %s208, %s209
      %p221 = scmp.eq.s32.totalorder %s42, 1
      %p222 = por %p220, %p221
      %p224 = scmp.ne.s32.totalorder %s209, %s223
      %p225 = scmp.eq.s32.totalorder %s42, 0
      %p226 = por %p224, %p225
      %s228 = sadd.s32 %s227, 1
      %p231 = scmp.eq.s32.totalorder %s36, 1
      %p232 = scmp.ne.s32.totalorder %s227, %s229
      %p233 = scmp.eq.s32.totalorder %s36, 0
      %p234 = por %p232, %p233
      %p235 = scmp.ne.s32.totalorder %s227, %s229
      %p236 = scmp.eq.s32.totalorder %s41, 1
      %p237 = por %p235, %p236
      %p238 = scmp.ne.s32.totalorder %s229, %s230
      %p239 = scmp.eq.s32.totalorder %s41, 0
      %p240 = por %p238, %p239
      %p241 = scmp.ne.s32.totalorder %s229, %s230
      %p242 = scmp.eq.s32.totalorder %s42, 1
      %p243 = por %p241, %p242
      %p245 = scmp.ne.s32.totalorder %s230, %s244
      %p246 = scmp.eq.s32.totalorder %s42, 0
      %p247 = por %p245, %p246
      %s249 = sadd.s32 %s248, 1
      %p252 = scmp.eq.s32.totalorder %s36, 1
      %p253 = scmp.ne.s32.totalorder %s248, %s250
      %p254 = scmp.eq.s32.totalorder %s36, 0
      %p255 = por %p253, %p254
      %p256 = scmp.ne.s32.totalorder %s248, %s250
      %p257 = scmp.eq.s32.totalorder %s41, 1
      %p258 = por %p256, %p257
      %p259 = scmp.ne.s32.totalorder %s250, %s251
      %p260 = scmp.eq.s32.totalorder %s41, 0
      %p261 = por %p259, %p260
      %p262 = scmp.ne.s32.totalorder %s250, %s251
      %p263 = scmp.eq.s32.totalorder %s42, 1
      %p264 = por %p262, %p263
      %p266 = scmp.ne.s32.totalorder %s251, %s265
      %p267 = scmp.eq.s32.totalorder %s42, 0
      %p268 = por %p266, %p267
      %s270 = sadd.s32 %s269, 1
      %p273 = scmp.eq.s32.totalorder %s36, 1
      %p274 = scmp.ne.s32.totalorder %s269, %s271
      %p275 = scmp.eq.s32.totalorder %s36, 0
      %p276 = por %p274, %p275
      %p277 = scmp.ne.s32.totalorder %s269, %s271
      %p278 = scmp.eq.s32.totalorder %s41, 1
      %p279 = por %p277, %p278
      %p280 = scmp.ne.s32.totalorder %s271, %s272
      %p281 = scmp.eq.s32.totalorder %s41, 0
      %p282 = por %p280, %p281
      %p283 = scmp.ne.s32.totalorder %s271, %s272
      %p284 = scmp.eq.s32.totalorder %s42, 1
      %p285 = por %p283, %p284
      %p287 = scmp.ne.s32.totalorder %s272, %s286
      %p288 = scmp.eq.s32.totalorder %s42, 0
      %p289 = por %p287, %p288
      %s291 = sadd.s32 %s290, 1
      %p294 = scmp.eq.s32.totalorder %s36, 1
      %p295 = scmp.ne.s32.totalorder %s290, %s292
      %p296 = scmp.eq.s32.totalorder %s36, 0
      %p297 = por %p295, %p296
      %p298 = scmp.ne.s32.totalorder %s290, %s292
      %p299 = scmp.eq.s32.totalorder %s41, 1
      %p300 = por %p298, %p299
      %p301 = scmp.ne.s32.totalorder %s292, %s293
      %p302 = scmp.eq.s32.totalorder %s41, 0
      %p303 = por %p301, %p302
      %p304 = scmp.ne.s32.totalorder %s292, %s293
      %p305 = scmp.eq.s32.totalorder %s42, 1
      %p306 = por %p304, %p305
      %p308 = scmp.ne.s32.totalorder %s293, %s307
      %p309 = scmp.eq.s32.totalorder %s42, 0
      %p310 = por %p308, %p309
      %s311 = ssub.s32 %s36, %s43
      %p312 = scmp.eq.s32.totalorder %s311, 0
      %s314 = sadd.s32 %s313, 1
      %s315 = scalar_select %p312, %s313, %s314
      %p318 = pneg %p312
      %p319 = scmp.eq.s32.totalorder %s36, 1
      %p320 = por %p318, %p319
      %p321 = scmp.ne.s32.totalorder %s313, %s316
      %p322 = scmp.eq.s32.totalorder %s36, 0
      %p323 = por %p321, %p322
      %p324 = scmp.ne.s32.totalorder %s313, %s316
      %p325 = scmp.eq.s32.totalorder %s41, 1
      %p326 = por %p324, %p325
      %p327 = scmp.ne.s32.totalorder %s316, %s317
      %p328 = scmp.eq.s32.totalorder %s41, 0
      %p329 = por %p327, %p328
      %p330 = scmp.ne.s32.totalorder %s316, %s317
      %p331 = scmp.eq.s32.totalorder %s42, 1
      %p332 = por %p330, %p331
      %p334 = scmp.ne.s32.totalorder %s317, %s333
      %p335 = scmp.eq.s32.totalorder %s42, 0
      %p336 = por %p334, %p335
      %s337 = ssub.s32 %s36, %s43
      %p338 = scmp.eq.s32.totalorder %s337, 0
      %s340 = sadd.s32 %s339, 1
      %s341 = scalar_select %p338, %s339, %s340
      %p344 = pneg %p338
      %p345 = scmp.eq.s32.totalorder %s36, 1
      %p346 = por %p344, %p345
      %p347 = scmp.ne.s32.totalorder %s339, %s342
      %p348 = scmp.eq.s32.totalorder %s36, 0
      %p349 = por %p347, %p348
      %p350 = scmp.ne.s32.totalorder %s339, %s342
      %p351 = scmp.eq.s32.totalorder %s41, 1
      %p352 = por %p350, %p351
      %p353 = scmp.ne.s32.totalorder %s342, %s343
      %p354 = scmp.eq.s32.totalorder %s41, 0
      %p355 = por %p353, %p354
      %p356 = scmp.ne.s32.totalorder %s342, %s343
      %p357 = scmp.eq.s32.totalorder %s42, 1
      %p358 = por %p356, %p357
      %p360 = scmp.ne.s32.totalorder %s343, %s359
      %p361 = scmp.eq.s32.totalorder %s42, 0
      %p362 = por %p360, %p361
      %s363 = ssub.s32 %s36, %s43
      %p364 = scmp.eq.s32.totalorder %s363, 0
      %s366 = sadd.s32 %s365, 1
      %s367 = scalar_select %p364, %s365, %s366
      %p370 = pneg %p364
      %p371 = scmp.eq.s32.totalorder %s36, 1
      %p372 = por %p370, %p371
      %p373 = scmp.ne.s32.totalorder %s365, %s368
      %p374 = scmp.eq.s32.totalorder %s36, 0
      %p375 = por %p373, %p374
      %p376 = scmp.ne.s32.totalorder %s365, %s368
      %p377 = scmp.eq.s32.totalorder %s41, 1
      %p378 = por %p376, %p377
      %p379 = scmp.ne.s32.totalorder %s368, %s369
      %p380 = scmp.eq.s32.totalorder %s41, 0
      %p381 = por %p379, %p380
      %p382 = scmp.ne.s32.totalorder %s368, %s369
      %p383 = scmp.eq.s32.totalorder %s42, 1
      %p384 = por %p382, %p383
      %p386 = scmp.ne.s32.totalorder %s369, %s385
      %p387 = scmp.eq.s32.totalorder %s42, 0
      %p388 = por %p386, %p387
      %p389 = scmp.le.s32.totalorder 1, %s36
      %p390 = scmp.lt.s32.totalorder %s36, 3
      %p391 = pnand %p389, %p390
      %p392 = pneg %p391
      // Predicated region
      $region9: #{tpu_custom_call.1} parent=5 // pred_check
        _
      $region10: #{tpu_custom_call.1} parent=5 // pred_check_branch
        %394 = sbr.rel (%p391) target = $region12
      $region11: #{tpu_custom_call.1} parent=5 // pred_region
        %s395 = ssub.s32 %s36, 1
        // Predicated region
        $region13: #{tpu_custom_call.1} parent=11 // pred_check
          %p396 = pneg %p135
        $region14: #{tpu_custom_call.1} parent=11 // pred_check_branch
          %398 = sbr.rel (%p396) target = $region16
        $region15: #{tpu_custom_call.1} parent=11 // pred_region
          %400 = vsyncadd [#allocation9], 0
          %s402 = sshll.u32 %s3, 4
          %s403 = int_to_ptr.hbm [resolvable:$true] %s402
          %s404 = sshll.u32 [#allocation8], 4
          %s405 = int_to_ptr.vmem [resolvable:$true] %s404
          %407 = dma.hbm_to_vmem [thread:$0]  %s403, 128, %s405, [#allocation9]
        $region16: #{tpu_custom_call.1} parent=11 // pred_fallthru
          _
        // Predicated region
        $region17: #{tpu_custom_call.1} parent=11 // pred_check
          %p408 = pneg %p156
        $region18: #{tpu_custom_call.1} parent=11 // pred_check_branch
          %410 = sbr.rel (%p408) target = $region20
        $region19: #{tpu_custom_call.1} parent=11 // pred_region
          %412 = vsyncadd [#allocation9], 0
          %s413 = sshll.u32 %s4, 4
          %s414 = int_to_ptr.hbm [resolvable:$true] %s413
          %s415 = sshll.u32 [#allocation10], 4
          %s416 = int_to_ptr.vmem [resolvable:$true] %s415
          %421 = dma.hbm_to_vmem [thread:$0]  %s414, 2048, %s416, [#allocation9], 128, 128, 8
        $region20: #{tpu_custom_call.1} parent=11 // pred_fallthru
          _
        // Predicated region
        $region21: #{tpu_custom_call.1} parent=11 // pred_check
          %p422 = pneg %p177
        $region22: #{tpu_custom_call.1} parent=11 // pred_check_branch
          %424 = sbr.rel (%p422) target = $region24
        $region23: #{tpu_custom_call.1} parent=11 // pred_region
          _
        $region24: #{tpu_custom_call.1} parent=11 // pred_fallthru
          _
        // Predicated region
        $region25: #{tpu_custom_call.1} parent=11 // pred_check
          %p425 = pneg %p198
        $region26: #{tpu_custom_call.1} parent=11 // pred_check_branch
          %427 = sbr.rel (%p425) target = $region28
        $region27: #{tpu_custom_call.1} parent=11 // pred_region
          %429 = vsyncadd [#allocation12], 0
          %s430 = sshll.u32 %s6, 4
          %s431 = int_to_ptr.hbm [resolvable:$true] %s430
          %s432 = sshll.u32 [#allocation11], 4
          %s433 = int_to_ptr.vmem [resolvable:$true] %s432
          %438 = dma.hbm_to_vmem [thread:$0]  %s431, 2048, %s433, [#allocation12], 128, 128, 8
        $region28: #{tpu_custom_call.1} parent=11 // pred_fallthru
          _
        // Predicated region
        $region29: #{tpu_custom_call.1} parent=11 // pred_check
          %p439 = pneg %p219
        $region30: #{tpu_custom_call.1} parent=11 // pred_check_branch
          %441 = sbr.rel (%p439) target = $region32
        $region31: #{tpu_custom_call.1} parent=11 // pred_region
          %443 = vsyncadd [#allocation12], 0
          %s444 = sshll.u32 %s7, 4
          %s445 = int_to_ptr.hbm [resolvable:$true] %s444
          %s446 = sshll.u32 [#allocation13], 4
          %s447 = int_to_ptr.vmem [resolvable:$true] %s446
          %452 = dma.hbm_to_vmem [thread:$0]  %s445, 64, %s447, [#allocation12], 16, 16, 1
        $region32: #{tpu_custom_call.1} parent=11 // pred_fallthru
          _
        // Predicated region
        $region33: #{tpu_custom_call.1} parent=11 // pred_check
          %p453 = pneg %p240
        $region34: #{tpu_custom_call.1} parent=11 // pred_check_branch
          %455 = sbr.rel (%p453) target = $region36
        $region35: #{tpu_custom_call.1} parent=11 // pred_region
          %457 = vsyncadd [#allocation15], 0
          %s458 = sshll.u32 %s8, 4
          %s459 = int_to_ptr.hbm [resolvable:$true] %s458
          %s460 = sshll.u32 [#allocation14], 4
          %s461 = int_to_ptr.vmem [resolvable:$true] %s460
          %466 = dma.hbm_to_vmem [thread:$0]  %s459, 512, %s461, [#allocation15], 128, 128, 8
        $region36: #{tpu_custom_call.1} parent=11 // pred_fallthru
          _
        // Predicated region
        $region37: #{tpu_custom_call.1} parent=11 // pred_check
          %p467 = pneg %p261
        $region38: #{tpu_custom_call.1} parent=11 // pred_check_branch
          %469 = sbr.rel (%p467) target = $region40
        $region39: #{tpu_custom_call.1} parent=11 // pred_region
          _
        $region40: #{tpu_custom_call.1} parent=11 // pred_fallthru
          _
        // Predicated region
        $region41: #{tpu_custom_call.1} parent=11 // pred_check
          %p470 = pneg %p282
        $region42: #{tpu_custom_call.1} parent=11 // pred_check_branch
          %472 = sbr.rel (%p470) target = $region44
        $region43: #{tpu_custom_call.1} parent=11 // pred_region
          %474 = vsyncadd [#allocation15], 0
          %s475 = sshll.u32 %s10, 4
          %s476 = int_to_ptr.hbm [resolvable:$true] %s475
          %s477 = sshll.u32 [#allocation16], 4
          %s478 = int_to_ptr.vmem [resolvable:$true] %s477
          %483 = dma.hbm_to_vmem [thread:$0]  %s476, 512, %s478, [#allocation15], 128, 128, 8
        $region44: #{tpu_custom_call.1} parent=11 // pred_fallthru
          _
        // Predicated region
        $region45: #{tpu_custom_call.1} parent=11 // pred_check
          %p484 = pneg %p303
        $region46: #{tpu_custom_call.1} parent=11 // pred_check_branch
          %486 = sbr.rel (%p484) target = $region48
        $region47: #{tpu_custom_call.1} parent=11 // pred_region
          _
        $region48: #{tpu_custom_call.1} parent=11 // pred_fallthru
          _
      $region12: #{tpu_custom_call.1} parent=5 // pred_fallthru
        _
      %p487 = scmp.lt.s32.totalorder %s36, 2
      // Predicated region
      $region49: #{tpu_custom_call.1} parent=5 // pred_check
        %p488 = pneg %p487
      $region50: #{tpu_custom_call.1} parent=5 // pred_check_branch
        %490 = sbr.rel (%p488) target = $region52
      $region51: #{tpu_custom_call.1} parent=5 // pred_region
        // Predicated region
        $region53: #{tpu_custom_call.1} parent=51 // pred_check
          %p491 = pneg %p56
        $region54: #{tpu_custom_call.1} parent=51 // pred_check_branch
          %493 = sbr.rel (%p491) target = $region56
        $region55: #{tpu_custom_call.1} parent=51 // pred_region
          %s494 = sand.u32 %s46, 1
          %s495 = scalar_lea.sflag [#allocation3], %s494
          %s496 = sand.u32 %s46, 1
          %s497 = smul.addr %s496, 8
          %s498 = scalar_lea.vmem [#allocation2], %s497
          %500 = vsyncadd %s495, 0
          %s501 = smul.addr %s36, 8
          %s502 = scalar_lea.hbm %s0, %s501
          %s504 = sshll.u32 %s502, 4
          %s505 = int_to_ptr.hbm [resolvable:$true] %s504
          %s506 = sshll.u32 %s498, 4
          %s507 = int_to_ptr.vmem [resolvable:$true] %s506
          %509 = dma.hbm_to_vmem [thread:$0]  %s505, 128, %s507, %s495
        $region56: #{tpu_custom_call.1} parent=51 // pred_fallthru
          _
        // Predicated region
        $region57: #{tpu_custom_call.1} parent=51 // pred_check
          %p510 = pneg %p82
        $region58: #{tpu_custom_call.1} parent=51 // pred_check_branch
          %512 = sbr.rel (%p510) target = $region60
        $region59: #{tpu_custom_call.1} parent=51 // pred_region
          %s513 = sand.u32 %s36, 1
          %s514 = scalar_lea.sflag [#allocation6], %s513
          %s515 = sand.u32 %s72, 1
          %s516 = smul.addr %s515, 8
          %s517 = scalar_lea.vmem [#allocation5], %s516
          %519 = vsyncadd %s514, 0
          %s520 = smul.addr %s36, 8
          %s521 = scalar_lea.hbm %s1, %s520
          %s523 = sshll.u32 %s521, 4
          %s524 = int_to_ptr.hbm [resolvable:$true] %s523
          %s525 = sshll.u32 %s517, 4
          %s526 = int_to_ptr.vmem [resolvable:$true] %s525
          %528 = dma.hbm_to_vmem [thread:$0]  %s524, 128, %s526, %s514
        $region60: #{tpu_custom_call.1} parent=51 // pred_fallthru
          _
        // Predicated region
        $region61: #{tpu_custom_call.1} parent=51 // pred_check
          %p529 = pneg %p108
        $region62: #{tpu_custom_call.1} parent=51 // pred_check_branch
          %531 = sbr.rel (%p529) target = $region64
        $region63: #{tpu_custom_call.1} parent=51 // pred_region
          %s532 = sand.u32 %s36, 1
          %s533 = scalar_lea.sflag [#allocation6], %s532
          %s534 = sand.u32 %s98, 1
          %s535 = smul.addr %s534, 8
          %s536 = scalar_lea.vmem [#allocation7], %s535
          %538 = vsyncadd %s533, 0
          %s539 = smul.addr %s36, 8
          %s540 = scalar_lea.hbm %s2, %s539
          %s542 = sshll.u32 %s540, 4
          %s543 = int_to_ptr.hbm [resolvable:$true] %s542
          %s544 = sshll.u32 %s536, 4
          %s545 = int_to_ptr.vmem [resolvable:$true] %s544
          %547 = dma.hbm_to_vmem [thread:$0]  %s543, 128, %s545, %s533
        $region64: #{tpu_custom_call.1} parent=51 // pred_fallthru
          _
      $region52: #{tpu_custom_call.1} parent=5 // pred_fallthru
        _
      %p548 = scmp.le.s32.totalorder 1, %s36
      %p549 = scmp.lt.s32.totalorder %s36, 3
      %p550 = pnand %p548, %p549
      %p551 = pneg %p550
      // Predicated region
      $region65: #{tpu_custom_call.1} parent=5 // pred_check
        _
      $region66: #{tpu_custom_call.1} parent=5 // pred_check_branch
        %553 = sbr.rel (%p550) target = $region68
      $region67: #{tpu_custom_call.1} parent=5 // pred_region
        %s554 = ssub.s32 %s36, 1
        %s555 = sand.u32 %s49, 1
        %s556 = scalar_lea.sflag [#allocation3], %s555
        %s557 = sand.u32 %s49, 1
        %s558 = smul.addr %s557, 8
        %s559 = scalar_lea.vmem [#allocation2], %s558
        // Predicated region
        $region69: #{tpu_custom_call.1} parent=67 // pred_check
          %p560 = pneg %p62
        $region70: #{tpu_custom_call.1} parent=67 // pred_check_branch
          %562 = sbr.rel (%p560) target = $region72
        $region71: #{tpu_custom_call.1} parent=67 // pred_region
          %564 = dma.done %s556, 128
        $region72: #{tpu_custom_call.1} parent=67 // pred_fallthru
          _
        %s565 = sand.u32 %s41, 1
        %s566 = scalar_lea.sflag [#allocation6], %s565
        %s567 = sand.u32 %s75, 1
        %s568 = smul.addr %s567, 8
        %s569 = scalar_lea.vmem [#allocation5], %s568
        // Predicated region
        $region73: #{tpu_custom_call.1} parent=67 // pred_check
          %p570 = pneg %p88
        $region74: #{tpu_custom_call.1} parent=67 // pred_check_branch
          %572 = sbr.rel (%p570) target = $region76
        $region75: #{tpu_custom_call.1} parent=67 // pred_region
          %574 = dma.done %s566, 128
        $region76: #{tpu_custom_call.1} parent=67 // pred_fallthru
          _
        %s575 = sand.u32 %s41, 1
        %s576 = scalar_lea.sflag [#allocation6], %s575
        %s577 = sand.u32 %s101, 1
        %s578 = smul.addr %s577, 8
        %s579 = scalar_lea.vmem [#allocation7], %s578
        // Predicated region
        $region77: #{tpu_custom_call.1} parent=67 // pred_check
          %p580 = pneg %p114
        $region78: #{tpu_custom_call.1} parent=67 // pred_check_branch
          %582 = sbr.rel (%p580) target = $region80
        $region79: #{tpu_custom_call.1} parent=67 // pred_region
          %584 = dma.done %s576, 128
        $region80: #{tpu_custom_call.1} parent=67 // pred_fallthru
          _
        // Predicated region
        $region81: #{tpu_custom_call.1} parent=67 // pred_check
          %p585 = pneg %p135
        $region82: #{tpu_custom_call.1} parent=67 // pred_check_branch
          %587 = sbr.rel (%p585) target = $region84
        $region83: #{tpu_custom_call.1} parent=67 // pred_region
          %589 = dma.done [#allocation9], 128
        $region84: #{tpu_custom_call.1} parent=67 // pred_fallthru
          _
        // Predicated region
        $region85: #{tpu_custom_call.1} parent=67 // pred_check
          %p590 = pneg %p156
        $region86: #{tpu_custom_call.1} parent=67 // pred_check_branch
          %592 = sbr.rel (%p590) target = $region88
        $region87: #{tpu_custom_call.1} parent=67 // pred_region
          %594 = dma.done [#allocation9], 2048
        $region88: #{tpu_custom_call.1} parent=67 // pred_fallthru
          _
        // Predicated region
        $region89: #{tpu_custom_call.1} parent=67 // pred_check
          %p595 = pneg %p198
        $region90: #{tpu_custom_call.1} parent=67 // pred_check_branch
          %597 = sbr.rel (%p595) target = $region92
        $region91: #{tpu_custom_call.1} parent=67 // pred_region
          %599 = dma.done [#allocation12], 2048
        $region92: #{tpu_custom_call.1} parent=67 // pred_fallthru
          _
        // Predicated region
        $region93: #{tpu_custom_call.1} parent=67 // pred_check
          %p600 = pneg %p219
        $region94: #{tpu_custom_call.1} parent=67 // pred_check_branch
          %602 = sbr.rel (%p600) target = $region96
        $region95: #{tpu_custom_call.1} parent=67 // pred_region
          %604 = dma.done [#allocation12], 64
        $region96: #{tpu_custom_call.1} parent=67 // pred_fallthru
          _
        // Predicated region
        $region97: #{tpu_custom_call.1} parent=67 // pred_check
          %p605 = pneg %p240
        $region98: #{tpu_custom_call.1} parent=67 // pred_check_branch
          %607 = sbr.rel (%p605) target = $region100
        $region99: #{tpu_custom_call.1} parent=67 // pred_region
          %609 = dma.done [#allocation15], 512
        $region100: #{tpu_custom_call.1} parent=67 // pred_fallthru
          _
        // Predicated region
        $region101: #{tpu_custom_call.1} parent=67 // pred_check
          %p610 = pneg %p282
        $region102: #{tpu_custom_call.1} parent=67 // pred_check_branch
          %612 = sbr.rel (%p610) target = $region104
        $region103: #{tpu_custom_call.1} parent=67 // pred_region
          %614 = dma.done [#allocation15], 512
        $region104: #{tpu_custom_call.1} parent=67 // pred_fallthru
          _
        %s615 = sand.u32 %s49, 1
        %s616 = scalar_lea.sflag [#allocation3], %s615
        %s617 = sand.u32 %s49, 1
        %s618 = smul.addr %s617, 8
        %s619 = scalar_lea.vmem [#allocation2], %s618
        %p620 = pneg %p62
        %p621 = pneg %p59
        %s622 = sand.u32 %s41, 1
        %s623 = scalar_lea.sflag [#allocation6], %s622
        %s624 = sand.u32 %s75, 1
        %s625 = smul.addr %s624, 8
        %s626 = scalar_lea.vmem [#allocation5], %s625
        %p627 = pneg %p88
        %p628 = pneg %p85
        %s629 = sand.u32 %s41, 1
        %s630 = scalar_lea.sflag [#allocation6], %s629
        %s631 = sand.u32 %s101, 1
        %s632 = smul.addr %s631, 8
        %s633 = scalar_lea.vmem [#allocation7], %s632
        %p634 = pneg %p114
        %p635 = pneg %p111
        %p636 = pneg %p135
        %p637 = pneg %p132
        %p638 = pneg %p156
        %p639 = pneg %p153
        %p640 = pneg %p177
        %p641 = pneg %p174
        %p642 = pneg %p198
        %p643 = pneg %p195
        %p644 = pneg %p219
        %p645 = pneg %p216
        %p646 = pneg %p240
        %p647 = pneg %p237
        %p648 = pneg %p261
        %p649 = pneg %p258
        %p650 = pneg %p282
        %p651 = pneg %p279
        %p652 = pneg %p303
        %p653 = pneg %p300
        %p654 = pneg %p329
        %p655 = pneg %p326
        %s656 = sand.u32 %s316, 1
        %s657 = scalar_lea.sflag [#allocation4], %s656
        %s658 = sand.u32 %s316, 1
        %s659 = smul.addr %s658, 8
        %s660 = scalar_lea.vmem [#allocation17], %s659
        %p661 = pneg %p355
        %p662 = pneg %p352
        %s663 = sand.u32 %s41, 1
        %s664 = scalar_lea.sflag [#allocation19], %s663
        %s665 = sand.u32 %s342, 1
        %s666 = smul.addr %s665, 8
        %s667 = scalar_lea.vmem [#allocation18], %s666
        %p668 = pneg %p381
        %p669 = pneg %p378
        %s670 = sand.u32 %s41, 1
        %s671 = scalar_lea.sflag [#allocation19], %s670
        %s672 = sand.u32 %s368, 1
        %s673 = smul.addr %s672, 8
        %s674 = scalar_lea.vmem [#allocation20], %s673
        %v675 = vld [vmem:[%s559] sm:$0xff]
        %v676 = vld [vmem:[%s569] sm:$0xff]
        %v677 = vld [vmem:[%s579] sm:$0xff]
        %v678 = vld [vmem:[#allocation14] sm:$0xff]
        %v679 = vld [vmem:[#allocation14 + $0x8] sm:$0xff]
        %v680 = vld [vmem:[#allocation14 + $0x10] sm:$0xff]
        %v681 = vld [vmem:[#allocation14 + $0x18] sm:$0xff]
        %v682 = vld [vmem:[%s9] sm:$0x1]
        %v684 = vperm.slane %v682, 0
        %vm686 = vcmask 261120
        %v688 = vsel %vm686, %v677, 0
        %690 = vmatpush.msra.mxu0 0.0
        %691 = vmatpush.msra.mxu0 0.0
        %692 = vmatpush.msra.mxu0 0.0
        %693 = vmatpush.msra.mxu0 0.0
        %694 = vmatpush.msra.mxu0 0.0
        %695 = vmatpush.msra.mxu0 0.0
        %696 = vmatpush.msra.mxu0 0.0
        %697 = vmatpush.msra.mxu0 0.0
        %698 = vmatpush.msra.mxu0 0.0
        %699 = vmatpush.msra.mxu0 0.0
        %700 = vmatpush.msra.mxu0 0.0
        %701 = vmatpush.msra.mxu0 0.0
        %702 = vmatpush.msra.mxu0 %v681
        %703 = vmatpush.msra.mxu0 %v680
        %704 = vmatpush.msra.mxu0 %v679
        %705 = vmatpush.msra.mxu0 %v678
        %706 = vmatmul.f32.gmra.mxu0 %v688
        %v707 = vpop.f32.mrf.mxu0
        %v708 = vadd.f32 %v684, %v707
        %709 = vdwg.mxu0
        %v710 = vld [vmem:[#allocation8] sm:$0xff]
        %vm711 = vcmp.gt.f32.partialorder %v710, 0.5
        %v712 = vld [vmem:[#allocation10] sm:$0xff]
        %v713 = vld [vmem:[#allocation10 + $0x8] sm:$0xff]
        %v714 = vld [vmem:[#allocation10 + $0x10] sm:$0xff]
        %v715 = vld [vmem:[#allocation10 + $0x18] sm:$0xff]
        %v716 = vld [vmem:[%s5] sm:$0x1]
        %v718 = vperm.slane %v716, 0
        %v721 = vsel %vm686, %v675, 0
        %723 = vmatpush.msra.mxu0 0.0
        %724 = vmatpush.msra.mxu0 0.0
        %725 = vmatpush.msra.mxu0 0.0
        %726 = vmatpush.msra.mxu0 0.0
        %727 = vmatpush.msra.mxu0 0.0
        %728 = vmatpush.msra.mxu0 0.0
        %729 = vmatpush.msra.mxu0 0.0
        %730 = vmatpush.msra.mxu0 0.0
        %731 = vmatpush.msra.mxu0 0.0
        %732 = vmatpush.msra.mxu0 0.0
        %733 = vmatpush.msra.mxu0 0.0
        %734 = vmatpush.msra.mxu0 0.0
        %735 = vmatpush.msra.mxu0 %v715
        %736 = vmatpush.msra.mxu0 %v714
        %737 = vmatpush.msra.mxu0 %v713
        %738 = vmatpush.msra.mxu0 %v712
        %739 = vmatmul.f32.gmra.mxu0 %v721
        %v740 = vpop.f32.mrf.mxu0
        %v741 = vadd.f32 %v718, %v740
        %742 = vdwg.mxu0
        %v743 = vld [vmem:[#allocation11] sm:$0xff]
        %v744 = vld [vmem:[#allocation11 + $0x8] sm:$0xff]
        %v745 = vld [vmem:[#allocation11 + $0x10] sm:$0xff]
        %v746 = vld [vmem:[#allocation11 + $0x18] sm:$0xff]
        %v747 = vld [vmem:[#allocation13] sm:$0x1]
        %v749 = vperm.slane %v747, 0
        %v752 = vsel %vm686, %v676, 0
        %754 = vmatpush.msra.mxu0 0.0
        %755 = vmatpush.msra.mxu0 0.0
        %756 = vmatpush.msra.mxu0 0.0
        %757 = vmatpush.msra.mxu0 0.0
        %758 = vmatpush.msra.mxu0 0.0
        %759 = vmatpush.msra.mxu0 0.0
        %760 = vmatpush.msra.mxu0 0.0
        %761 = vmatpush.msra.mxu0 0.0
        %762 = vmatpush.msra.mxu0 0.0
        %763 = vmatpush.msra.mxu0 0.0
        %764 = vmatpush.msra.mxu0 0.0
        %765 = vmatpush.msra.mxu0 0.0
        %766 = vmatpush.msra.mxu0 %v746
        %767 = vmatpush.msra.mxu0 %v745
        %768 = vmatpush.msra.mxu0 %v744
        %769 = vmatpush.msra.mxu0 %v743
        %770 = vmatmul.f32.gmra.mxu0 %v752
        %v771 = vpop.f32.mrf.mxu0
        %v772 = vadd.f32 %v749, %v771
        %773 = vdwg.mxu0
        %v775 = vsel %vm686, %v741, 0
        %v778 = vsel %vm686, %v772, 0
        %780 = vmatpush.xpose.msra.mxu0 0.0
        %781 = vmatpush.xpose.msra.mxu0 0.0
        %782 = vmatpush.xpose.msra.mxu0 0.0
        %783 = vmatpush.xpose.msra.mxu0 0.0
        %784 = vmatpush.xpose.msra.mxu0 0.0
        %785 = vmatpush.xpose.msra.mxu0 0.0
        %786 = vmatpush.xpose.msra.mxu0 0.0
        %787 = vmatpush.xpose.msra.mxu0 0.0
        %788 = vmatpush.xpose.msra.mxu0 0.0
        %789 = vmatpush.xpose.msra.mxu0 0.0
        %790 = vmatpush.xpose.msra.mxu0 0.0
        %791 = vmatpush.xpose.msra.mxu0 0.0
        %792 = vmatpush.xpose.msra.mxu0 0.0
        %793 = vmatpush.xpose.msra.mxu0 0.0
        %794 = vmatpush.xpose.msra.mxu0 0.0
        %795 = vmatpush.xpose.msra.mxu0 %v778
        %796 = vmatmul.f32.gmra.mxu0 %v775
        %v797 = vpop.f32.mrf.mxu0
        %v798 = vadd.f32 0.0, %v797
        %799 = vdwg.mxu0
        %v800 = vsel %vm711, -1e+09, %v798
        %vm801 = vcmask 64512
        %v802 = vsel %vm801, %v800, -inf
        %803 = vmax.xlane.f32.xlu0 %v802
        %v804 = vpop.xlane.xlu0 %803
        %v805 = vsub.f32 %v800, %v804
        %v806 = vmul.f32 %v805, 1.442695
        %v807 = vpow.pop %v806
        %v808 = vsel %vm801, %v807, 0.0
        %809 = vadd.xlane.f32.xlu0 %v808
        %v810 = vpop.xlane.xlu0 %809
        %v811 = vrcp.pop %v810
        %v812 = vmul.f32 %v807, %v811
        %v813 = vadd.f32 %v812, 0.0
        %s814 = scalar_lea.vmem [#allocation10], 32
        %v815 = vld [vmem:[%s814] sm:$0xff]
        %v816 = vld [vmem:[%s814 + $0x8] sm:$0xff]
        %v817 = vld [vmem:[%s814 + $0x10] sm:$0xff]
        %v818 = vld [vmem:[%s814 + $0x18] sm:$0xff]
        %s819 = scalar_lea.vmem %s5, 1
        %v820 = vld [vmem:[%s819] sm:$0x1]
        %v822 = vperm.slane %v820, 0
        %824 = vmatpush.msra.mxu0 0.0
        %825 = vmatpush.msra.mxu0 0.0
        %826 = vmatpush.msra.mxu0 0.0
        %827 = vmatpush.msra.mxu0 0.0
        %828 = vmatpush.msra.mxu0 0.0
        %829 = vmatpush.msra.mxu0 0.0
        %830 = vmatpush.msra.mxu0 0.0
        %831 = vmatpush.msra.mxu0 0.0
        %832 = vmatpush.msra.mxu0 0.0
        %833 = vmatpush.msra.mxu0 0.0
        %834 = vmatpush.msra.mxu0 0.0
        %835 = vmatpush.msra.mxu0 0.0
        %836 = vmatpush.msra.mxu0 %v818
        %837 = vmatpush.msra.mxu0 %v817
        %838 = vmatpush.msra.mxu0 %v816
        %839 = vmatpush.msra.mxu0 %v815
        %840 = vmatmul.f32.gmra.mxu0 %v721
        %v841 = vpop.f32.mrf.mxu0
        %v842 = vadd.f32 %v822, %v841
        %843 = vdwg.mxu0
        %s844 = scalar_lea.vmem [#allocation11], 32
        %v845 = vld [vmem:[%s844] sm:$0xff]
        %v846 = vld [vmem:[%s844 + $0x8] sm:$0xff]
        %v847 = vld [vmem:[%s844 + $0x10] sm:$0xff]
        %v848 = vld [vmem:[%s844 + $0x18] sm:$0xff]
        %s849 = scalar_lea.vmem [#allocation13], 1
        %v850 = vld [vmem:[%s849] sm:$0x1]
        %v852 = vperm.slane %v850, 0
        %854 = vmatpush.msra.mxu0 0.0
        %855 = vmatpush.msra.mxu0 0.0
        %856 = vmatpush.msra.mxu0 0.0
        %857 = vmatpush.msra.mxu0 0.0
        %858 = vmatpush.msra.mxu0 0.0
        %859 = vmatpush.msra.mxu0 0.0
        %860 = vmatpush.msra.mxu0 0.0
        %861 = vmatpush.msra.mxu0 0.0
        %862 = vmatpush.msra.mxu0 0.0
        %863 = vmatpush.msra.mxu0 0.0
        %864 = vmatpush.msra.mxu0 0.0
        %865 = vmatpush.msra.mxu0 0.0
        %866 = vmatpush.msra.mxu0 %v848
        %867 = vmatpush.msra.mxu0 %v847
        %868 = vmatpush.msra.mxu0 %v846
        %869 = vmatpush.msra.mxu0 %v845
        %870 = vmatmul.f32.gmra.mxu0 %v752
        %v871 = vpop.f32.mrf.mxu0
        %v872 = vadd.f32 %v852, %v871
        %873 = vdwg.mxu0
        %v875 = vsel %vm686, %v842, 0
        %v878 = vsel %vm686, %v872, 0
        %880 = vmatpush.xpose.msra.mxu0 0.0
        %881 = vmatpush.xpose.msra.mxu0 0.0
        %882 = vmatpush.xpose.msra.mxu0 0.0
        %883 = vmatpush.xpose.msra.mxu0 0.0
        %884 = vmatpush.xpose.msra.mxu0 0.0
        %885 = vmatpush.xpose.msra.mxu0 0.0
        %886 = vmatpush.xpose.msra.mxu0 0.0
        %887 = vmatpush.xpose.msra.mxu0 0.0
        %888 = vmatpush.xpose.msra.mxu0 0.0
        %889 = vmatpush.xpose.msra.mxu0 0.0
        %890 = vmatpush.xpose.msra.mxu0 0.0
        %891 = vmatpush.xpose.msra.mxu0 0.0
        %892 = vmatpush.xpose.msra.mxu0 0.0
        %893 = vmatpush.xpose.msra.mxu0 0.0
        %894 = vmatpush.xpose.msra.mxu0 0.0
        %895 = vmatpush.xpose.msra.mxu0 %v878
        %896 = vmatmul.f32.gmra.mxu0 %v875
        %v897 = vpop.f32.mrf.mxu0
        %v898 = vadd.f32 0.0, %v897
        %899 = vdwg.mxu0
        %v900 = vsel %vm711, -1e+09, %v898
        %v901 = vsel %vm801, %v900, -inf
        %902 = vmax.xlane.f32.xlu0 %v901
        %v903 = vpop.xlane.xlu0 %902
        %v904 = vsub.f32 %v900, %v903
        %v905 = vmul.f32 %v904, 1.442695
        %v906 = vpow.pop %v905
        %v907 = vsel %vm801, %v906, 0.0
        %908 = vadd.xlane.f32.xlu0 %v907
        %v909 = vpop.xlane.xlu0 %908
        %v910 = vrcp.pop %v909
        %v911 = vmul.f32 %v906, %v910
        %v912 = vadd.f32 %v813, %v911
        %s913 = scalar_lea.vmem [#allocation10], 64
        %v914 = vld [vmem:[%s913] sm:$0xff]
        %v915 = vld [vmem:[%s913 + $0x8] sm:$0xff]
        %v916 = vld [vmem:[%s913 + $0x10] sm:$0xff]
        %v917 = vld [vmem:[%s913 + $0x18] sm:$0xff]
        %s918 = scalar_lea.vmem %s5, 2
        %v919 = vld [vmem:[%s918] sm:$0x1]
        %v921 = vperm.slane %v919, 0
        %923 = vmatpush.msra.mxu0 0.0
        %924 = vmatpush.msra.mxu0 0.0
        %925 = vmatpush.msra.mxu0 0.0
        %926 = vmatpush.msra.mxu0 0.0
        %927 = vmatpush.msra.mxu0 0.0
        %928 = vmatpush.msra.mxu0 0.0
        %929 = vmatpush.msra.mxu0 0.0
        %930 = vmatpush.msra.mxu0 0.0
        %931 = vmatpush.msra.mxu0 0.0
        %932 = vmatpush.msra.mxu0 0.0
        %933 = vmatpush.msra.mxu0 0.0
        %934 = vmatpush.msra.mxu0 0.0
        %935 = vmatpush.msra.mxu0 %v917
        %936 = vmatpush.msra.mxu0 %v916
        %937 = vmatpush.msra.mxu0 %v915
        %938 = vmatpush.msra.mxu0 %v914
        %939 = vmatmul.f32.gmra.mxu0 %v721
        %v940 = vpop.f32.mrf.mxu0
        %v941 = vadd.f32 %v921, %v940
        %942 = vdwg.mxu0
        %s943 = scalar_lea.vmem [#allocation11], 64
        %v944 = vld [vmem:[%s943] sm:$0xff]
        %v945 = vld [vmem:[%s943 + $0x8] sm:$0xff]
        %v946 = vld [vmem:[%s943 + $0x10] sm:$0xff]
        %v947 = vld [vmem:[%s943 + $0x18] sm:$0xff]
        %s948 = scalar_lea.vmem [#allocation13], 2
        %v949 = vld [vmem:[%s948] sm:$0x1]
        %v951 = vperm.slane %v949, 0
        %953 = vmatpush.msra.mxu0 0.0
        %954 = vmatpush.msra.mxu0 0.0
        %955 = vmatpush.msra.mxu0 0.0
        %956 = vmatpush.msra.mxu0 0.0
        %957 = vmatpush.msra.mxu0 0.0
        %958 = vmatpush.msra.mxu0 0.0
        %959 = vmatpush.msra.mxu0 0.0
        %960 = vmatpush.msra.mxu0 0.0
        %961 = vmatpush.msra.mxu0 0.0
        %962 = vmatpush.msra.mxu0 0.0
        %963 = vmatpush.msra.mxu0 0.0
        %964 = vmatpush.msra.mxu0 0.0
        %965 = vmatpush.msra.mxu0 %v947
        %966 = vmatpush.msra.mxu0 %v946
        %967 = vmatpush.msra.mxu0 %v945
        %968 = vmatpush.msra.mxu0 %v944
        %969 = vmatmul.f32.gmra.mxu0 %v752
        %v970 = vpop.f32.mrf.mxu0
        %v971 = vadd.f32 %v951, %v970
        %972 = vdwg.mxu0
        %v974 = vsel %vm686, %v941, 0
        %v977 = vsel %vm686, %v971, 0
        %979 = vmatpush.xpose.msra.mxu0 0.0
        %980 = vmatpush.xpose.msra.mxu0 0.0
        %981 = vmatpush.xpose.msra.mxu0 0.0
        %982 = vmatpush.xpose.msra.mxu0 0.0
        %983 = vmatpush.xpose.msra.mxu0 0.0
        %984 = vmatpush.xpose.msra.mxu0 0.0
        %985 = vmatpush.xpose.msra.mxu0 0.0
        %986 = vmatpush.xpose.msra.mxu0 0.0
        %987 = vmatpush.xpose.msra.mxu0 0.0
        %988 = vmatpush.xpose.msra.mxu0 0.0
        %989 = vmatpush.xpose.msra.mxu0 0.0
        %990 = vmatpush.xpose.msra.mxu0 0.0
        %991 = vmatpush.xpose.msra.mxu0 0.0
        %992 = vmatpush.xpose.msra.mxu0 0.0
        %993 = vmatpush.xpose.msra.mxu0 0.0
        %994 = vmatpush.xpose.msra.mxu0 %v977
        %995 = vmatmul.f32.gmra.mxu0 %v974
        %v996 = vpop.f32.mrf.mxu0
        %v997 = vadd.f32 0.0, %v996
        %998 = vdwg.mxu0
        %v999 = vsel %vm711, -1e+09, %v997
        %v1000 = vsel %vm801, %v999, -inf
        %1001 = vmax.xlane.f32.xlu0 %v1000
        %v1002 = vpop.xlane.xlu0 %1001
        %v1003 = vsub.f32 %v999, %v1002
        %v1004 = vmul.f32 %v1003, 1.442695
        %v1005 = vpow.pop %v1004
        %v1006 = vsel %vm801, %v1005, 0.0
        %1007 = vadd.xlane.f32.xlu0 %v1006
        %v1008 = vpop.xlane.xlu0 %1007
        %v1009 = vrcp.pop %v1008
        %v1010 = vmul.f32 %v1005, %v1009
        %v1011 = vadd.f32 %v912, %v1010
        %s1012 = scalar_lea.vmem [#allocation10], 96
        %v1013 = vld [vmem:[%s1012] sm:$0xff]
        %v1014 = vld [vmem:[%s1012 + $0x8] sm:$0xff]
        %v1015 = vld [vmem:[%s1012 + $0x10] sm:$0xff]
        %v1016 = vld [vmem:[%s1012 + $0x18] sm:$0xff]
        %s1017 = scalar_lea.vmem %s5, 3
        %v1018 = vld [vmem:[%s1017] sm:$0x1]
        %v1020 = vperm.slane %v1018, 0
        %1022 = vmatpush.msra.mxu0 0.0
        %1023 = vmatpush.msra.mxu0 0.0
        %1024 = vmatpush.msra.mxu0 0.0
        %1025 = vmatpush.msra.mxu0 0.0
        %1026 = vmatpush.msra.mxu0 0.0
        %1027 = vmatpush.msra.mxu0 0.0
        %1028 = vmatpush.msra.mxu0 0.0
        %1029 = vmatpush.msra.mxu0 0.0
        %1030 = vmatpush.msra.mxu0 0.0
        %1031 = vmatpush.msra.mxu0 0.0
        %1032 = vmatpush.msra.mxu0 0.0
        %1033 = vmatpush.msra.mxu0 0.0
        %1034 = vmatpush.msra.mxu0 %v1016
        %1035 = vmatpush.msra.mxu0 %v1015
        %1036 = vmatpush.msra.mxu0 %v1014
        %1037 = vmatpush.msra.mxu0 %v1013
        %1038 = vmatmul.f32.gmra.mxu0 %v721
        %v1039 = vpop.f32.mrf.mxu0
        %v1040 = vadd.f32 %v1020, %v1039
        %1041 = vdwg.mxu0
        %s1042 = scalar_lea.vmem [#allocation11], 96
        %v1043 = vld [vmem:[%s1042] sm:$0xff]
        %v1044 = vld [vmem:[%s1042 + $0x8] sm:$0xff]
        %v1045 = vld [vmem:[%s1042 + $0x10] sm:$0xff]
        %v1046 = vld [vmem:[%s1042 + $0x18] sm:$0xff]
        %s1047 = scalar_lea.vmem [#allocation13], 3
        %v1048 = vld [vmem:[%s1047] sm:$0x1]
        %v1050 = vperm.slane %v1048, 0
        %1052 = vmatpush.msra.mxu0 0.0
        %1053 = vmatpush.msra.mxu0 0.0
        %1054 = vmatpush.msra.mxu0 0.0
        %1055 = vmatpush.msra.mxu0 0.0
        %1056 = vmatpush.msra.mxu0 0.0
        %1057 = vmatpush.msra.mxu0 0.0
        %1058 = vmatpush.msra.mxu0 0.0
        %1059 = vmatpush.msra.mxu0 0.0
        %1060 = vmatpush.msra.mxu0 0.0
        %1061 = vmatpush.msra.mxu0 0.0
        %1062 = vmatpush.msra.mxu0 0.0
        %1063 = vmatpush.msra.mxu0 0.0
        %1064 = vmatpush.msra.mxu0 %v1046
        %1065 = vmatpush.msra.mxu0 %v1045
        %1066 = vmatpush.msra.mxu0 %v1044
        %1067 = vmatpush.msra.mxu0 %v1043
        %1068 = vmatmul.f32.gmra.mxu0 %v752
        %v1069 = vpop.f32.mrf.mxu0
        %v1070 = vadd.f32 %v1050, %v1069
        %1071 = vdwg.mxu0
        %v1073 = vsel %vm686, %v1040, 0
        %v1076 = vsel %vm686, %v1070, 0
        %1078 = vmatpush.xpose.msra.mxu0 0.0
        %1079 = vmatpush.xpose.msra.mxu0 0.0
        %1080 = vmatpush.xpose.msra.mxu0 0.0
        %1081 = vmatpush.xpose.msra.mxu0 0.0
        %1082 = vmatpush.xpose.msra.mxu0 0.0
        %1083 = vmatpush.xpose.msra.mxu0 0.0
        %1084 = vmatpush.xpose.msra.mxu0 0.0
        %1085 = vmatpush.xpose.msra.mxu0 0.0
        %1086 = vmatpush.xpose.msra.mxu0 0.0
        %1087 = vmatpush.xpose.msra.mxu0 0.0
        %1088 = vmatpush.xpose.msra.mxu0 0.0
        %1089 = vmatpush.xpose.msra.mxu0 0.0
        %1090 = vmatpush.xpose.msra.mxu0 0.0
        %1091 = vmatpush.xpose.msra.mxu0 0.0
        %1092 = vmatpush.xpose.msra.mxu0 0.0
        %1093 = vmatpush.xpose.msra.mxu0 %v1076
        %1094 = vmatmul.f32.gmra.mxu0 %v1073
        %v1095 = vpop.f32.mrf.mxu0
        %v1096 = vadd.f32 0.0, %v1095
        %1097 = vdwg.mxu0
        %v1098 = vsel %vm711, -1e+09, %v1096
        %v1099 = vsel %vm801, %v1098, -inf
        %1100 = vmax.xlane.f32.xlu0 %v1099
        %v1101 = vpop.xlane.xlu0 %1100
        %v1102 = vsub.f32 %v1098, %v1101
        %v1103 = vmul.f32 %v1102, 1.442695
        %v1104 = vpow.pop %v1103
        %v1105 = vsel %vm801, %v1104, 0.0
        %1106 = vadd.xlane.f32.xlu0 %v1105
        %v1107 = vpop.xlane.xlu0 %1106
        %v1108 = vrcp.pop %v1107
        %v1109 = vmul.f32 %v1104, %v1108
        %v1110 = vadd.f32 %v1011, %v1109
        %v1111 = vmul.f32 %v1110, 0.25
        %v1113 = vsel %vm801, %v1111, 0
        %1115 = vmatpush.msra.mxu0 0.0
        %1116 = vmatpush.msra.mxu0 0.0
        %1117 = vmatpush.msra.mxu0 0.0
        %1118 = vmatpush.msra.mxu0 0.0
        %1119 = vmatpush.msra.mxu0 0.0
        %1120 = vmatpush.msra.mxu0 0.0
        %1121 = vmatpush.msra.mxu0 0.0
        %1122 = vmatpush.msra.mxu0 0.0
        %1123 = vmatpush.msra.mxu0 0.0
        %1124 = vmatpush.msra.mxu0 0.0
        %1125 = vmatpush.msra.mxu0 0.0
        %1126 = vmatpush.msra.mxu0 0.0
        %1127 = vmatpush.msra.mxu0 0.0
        %1128 = vmatpush.msra.mxu0 0.0
        %1129 = vmatpush.msra.mxu0 0.0
        %1130 = vmatpush.msra.mxu0 %v708
        %1131 = vmatmul.f32.gmra.mxu0 %v1113
        %v1132 = vpop.f32.mrf.mxu0
        %v1133 = vadd.f32 0.0, %v1132
        %1134 = vdwg.mxu0
        %v1135 = vld [vmem:[#allocation16] sm:$0xff]
        %v1136 = vld [vmem:[#allocation16 + $0x8] sm:$0xff]
        %v1137 = vld [vmem:[#allocation16 + $0x10] sm:$0xff]
        %v1138 = vld [vmem:[#allocation16 + $0x18] sm:$0xff]
        %v1139 = vld [vmem:[%s11] sm:$0x1]
        %v1141 = vperm.slane %v1139, 0
        %v1144 = vsel %vm686, %v1133, 0
        %1146 = vmatpush.msra.mxu0 0.0
        %1147 = vmatpush.msra.mxu0 0.0
        %1148 = vmatpush.msra.mxu0 0.0
        %1149 = vmatpush.msra.mxu0 0.0
        %1150 = vmatpush.msra.mxu0 0.0
        %1151 = vmatpush.msra.mxu0 0.0
        %1152 = vmatpush.msra.mxu0 0.0
        %1153 = vmatpush.msra.mxu0 0.0
        %1154 = vmatpush.msra.mxu0 0.0
        %1155 = vmatpush.msra.mxu0 0.0
        %1156 = vmatpush.msra.mxu0 0.0
        %1157 = vmatpush.msra.mxu0 0.0
        %1158 = vmatpush.msra.mxu0 %v1138
        %1159 = vmatpush.msra.mxu0 %v1137
        %1160 = vmatpush.msra.mxu0 %v1136
        %1161 = vmatpush.msra.mxu0 %v1135
        %1162 = vmatmul.f32.gmra.mxu0 %v1144
        %v1163 = vpop.f32.mrf.mxu0
        %v1164 = vadd.f32 %v1141, %v1163
        %1165 = vdwg.mxu0
        %1166 = vst.msk [vmem:[%s660] sm:$0xff] %vm686, %v1164
        %1167 = vst.msk [vmem:[%s667] sm:$0xff] %vm686, %v1133
        %1168 = vst.msk [vmem:[%s674] sm:$0xff] %vm801, %v1111
        %s1169 = sand.u32 %s316, 1
        %s1170 = scalar_lea.sflag [#allocation4], %s1169
        %s1171 = sand.u32 %s316, 1
        %s1172 = smul.addr %s1171, 8
        %s1173 = scalar_lea.vmem [#allocation17], %s1172
        %s1174 = sand.u32 %s41, 1
        %s1175 = scalar_lea.sflag [#allocation19], %s1174
        %s1176 = sand.u32 %s342, 1
        %s1177 = smul.addr %s1176, 8
        %s1178 = scalar_lea.vmem [#allocation18], %s1177
        %s1179 = sand.u32 %s41, 1
        %s1180 = scalar_lea.sflag [#allocation19], %s1179
        %s1181 = sand.u32 %s368, 1
        %s1182 = smul.addr %s1181, 8
        %s1183 = scalar_lea.vmem [#allocation20], %s1182
        // Predicated region
        $region105: #{tpu_custom_call.1} parent=67 // pred_check
          %p1184 = pneg %p326
        $region106: #{tpu_custom_call.1} parent=67 // pred_check_branch
          %1186 = sbr.rel (%p1184) target = $region108
        $region107: #{tpu_custom_call.1} parent=67 // pred_region
          %1188 = vsyncadd %s1170, 0
          %s1189 = smul.addr %s41, 8
          %s1190 = scalar_lea.hbm %s12, %s1189
          %s1192 = sshll.u32 %s1173, 4
          %s1193 = int_to_ptr.vmem [resolvable:$true] %s1192
          %s1194 = sshll.u32 %s1190, 4
          %s1195 = int_to_ptr.hbm [resolvable:$true] %s1194
          %1197 = dma.vmem_to_hbm [thread:$0]  %s1193, 128, %s1195, %s1170
        $region108: #{tpu_custom_call.1} parent=67 // pred_fallthru
          _
        // Predicated region
        $region109: #{tpu_custom_call.1} parent=67 // pred_check
          %p1198 = pneg %p352
        $region110: #{tpu_custom_call.1} parent=67 // pred_check_branch
          %1200 = sbr.rel (%p1198) target = $region112
        $region111: #{tpu_custom_call.1} parent=67 // pred_region
          %1202 = vsyncadd %s1175, 0
          %s1203 = smul.addr %s41, 8
          %s1204 = scalar_lea.hbm %s13, %s1203
          %s1206 = sshll.u32 %s1178, 4
          %s1207 = int_to_ptr.vmem [resolvable:$true] %s1206
          %s1208 = sshll.u32 %s1204, 4
          %s1209 = int_to_ptr.hbm [resolvable:$true] %s1208
          %1211 = dma.vmem_to_hbm [thread:$0]  %s1207, 128, %s1209, %s1175
        $region112: #{tpu_custom_call.1} parent=67 // pred_fallthru
          _
        // Predicated region
        $region113: #{tpu_custom_call.1} parent=67 // pred_check
          %p1212 = pneg %p378
        $region114: #{tpu_custom_call.1} parent=67 // pred_check_branch
          %1214 = sbr.rel (%p1212) target = $region116
        $region115: #{tpu_custom_call.1} parent=67 // pred_region
          %1216 = vsyncadd %s1180, 0
          %s1217 = smul.addr %s41, 8
          %s1218 = scalar_lea.hbm %s14, %s1217
          %s1220 = sshll.u32 %s1183, 4
          %s1221 = int_to_ptr.vmem [resolvable:$true] %s1220
          %s1222 = sshll.u32 %s1218, 4
          %s1223 = int_to_ptr.hbm [resolvable:$true] %s1222
          %1225 = dma.vmem_to_hbm [thread:$0]  %s1221, 128, %s1223, %s1180
        $region116: #{tpu_custom_call.1} parent=67 // pred_fallthru
          _
      $region68: #{tpu_custom_call.1} parent=5 // pred_fallthru
        _
      %p1226 = scmp.le.s32.totalorder 2, %s36
      // Predicated region
      $region117: #{tpu_custom_call.1} parent=5 // pred_check
        %p1227 = pneg %p1226
      $region118: #{tpu_custom_call.1} parent=5 // pred_check_branch
        %1229 = sbr.rel (%p1227) target = $region120
      $region119: #{tpu_custom_call.1} parent=5 // pred_region
        %s1230 = ssub.s32 %s36, 2
        // Predicated region
        $region121: #{tpu_custom_call.1} parent=119 // pred_check
          %p1231 = pneg %p332
        $region122: #{tpu_custom_call.1} parent=119 // pred_check_branch
          %1233 = sbr.rel (%p1231) target = $region124
        $region123: #{tpu_custom_call.1} parent=119 // pred_region
          %s1234 = sand.u32 %s317, 1
          %s1235 = scalar_lea.sflag [#allocation4], %s1234
          %s1236 = sand.u32 %s317, 1
          %s1237 = smul.addr %s1236, 8
          %s1238 = scalar_lea.vmem [#allocation17], %s1237
          %1240 = dma.done %s1235, 128
        $region124: #{tpu_custom_call.1} parent=119 // pred_fallthru
          _
        // Predicated region
        $region125: #{tpu_custom_call.1} parent=119 // pred_check
          %p1241 = pneg %p358
        $region126: #{tpu_custom_call.1} parent=119 // pred_check_branch
          %1243 = sbr.rel (%p1241) target = $region128
        $region127: #{tpu_custom_call.1} parent=119 // pred_region
          %s1244 = sand.u32 %s42, 1
          %s1245 = scalar_lea.sflag [#allocation19], %s1244
          %s1246 = sand.u32 %s343, 1
          %s1247 = smul.addr %s1246, 8
          %s1248 = scalar_lea.vmem [#allocation18], %s1247
          %1250 = dma.done %s1245, 128
        $region128: #{tpu_custom_call.1} parent=119 // pred_fallthru
          _
        // Predicated region
        $region129: #{tpu_custom_call.1} parent=119 // pred_check
          %p1251 = pneg %p384
        $region130: #{tpu_custom_call.1} parent=119 // pred_check_branch
          %1253 = sbr.rel (%p1251) target = $region132
        $region131: #{tpu_custom_call.1} parent=119 // pred_region
          %s1254 = sand.u32 %s42, 1
          %s1255 = scalar_lea.sflag [#allocation19], %s1254
          %s1256 = sand.u32 %s369, 1
          %s1257 = smul.addr %s1256, 8
          %s1258 = scalar_lea.vmem [#allocation20], %s1257
          %1260 = dma.done %s1255, 128
        $region132: #{tpu_custom_call.1} parent=119 // pred_fallthru
          _
      $region120: #{tpu_custom_call.1} parent=5 // pred_fallthru
        _
    $region6: #{tpu_custom_call.1} parent=1 // loop_footer
      %s40 = sadd.s32 1, %s36
    $region7: #{tpu_custom_call.1} parent=1 // loop_footer_branch
      %35 = sbr.rel target = $region3
    $region8: #{tpu_custom_call.1} parent=1 // loop_exit
      _
    %1261 = vsyncpa [#allocation3], 1
    %s1262 = scalar_lea.sflag [#allocation3], 1
    %1263 = vsyncpa %s1262, 1
    %1264 = vsyncpa [#allocation6], 1
    %s1265 = scalar_lea.sflag [#allocation6], 1
    %1266 = vsyncpa %s1265, 1
    %1267 = vsyncpa [#allocation9], 1
    %1268 = vsyncpa [#allocation12], 1
    %1269 = vsyncpa [#allocation15], 1
    %1270 = vsyncpa [#allocation4], 1
    %s1271 = scalar_lea.sflag [#allocation4], 1
    %1272 = vsyncpa %s1271, 1
    %1273 = vsyncpa [#allocation19], 1
    %s1274 = scalar_lea.sflag [#allocation19], 1
    %1275 = vsyncpa %s1274, 1

</llo_original>
